<compile_context>
chip_gen: v6e
topology: v6e:2x2x1
jax: 0.10.0
libtpu: 0.0.40
codegen_flags: <defaults>
</compile_context>

<pallas_src>
from typing import NamedTuple

import jax
import jax.numpy as jnp
from jax.experimental import pallas as pl
from jax.experimental.pallas import tpu as pltpu

# ---------------------------------------------------------------------------
# Model configuration (lane/sublane friendly)
# ---------------------------------------------------------------------------
L = 16                 # lattice extent -> D = 256 sites
D = L * L
HALF = D // 2          # 128 (one vreg lane width)
HIDDEN = 128           # conditioner hidden width
M2 = 1.0               # mass^2 in the target action
LAM = 0.5              # quartic coupling in the target action
LOG2PI = 1.8378770664093453
STATS_LANES = 128      # lane-dense merged per-sample stats output


class Fields(NamedTuple):
    inputs: jnp.ndarray
    outputs: jnp.ndarray


class Actions(NamedTuple):
    base: jnp.ndarray
    target: jnp.ndarray
    pushforward: jnp.ndarray
    pullback: jnp.ndarray


# ---------------------------------------------------------------------------
# Pallas kernel: flow forward + base action + target action
# ---------------------------------------------------------------------------
def _flow_kernel(z_ref,
                 w1a_ref, b1a_ref, w2a_ref, b2a_ref,
                 w1b_ref, b1b_ref, w2b_ref, b2b_ref,
                 phi_ref, stats_ref):
    z = z_ref[...]                                   # (bm, D) f32
    xa = z[:, :HALF]
    xb = z[:, HALF:]

    # ---- base action: standard-normal negative log density ----------------
    base = (0.5 * jnp.sum(z * z, axis=-1, keepdims=True)
            + jnp.float32(0.5 * D * LOG2PI))

    # ---- coupling layer 1: condition on xa, transform xb -------------------
    # bf16 operands on the MXU, f32 accumulation; elementwise stays f32.
    h = jnp.tanh(
        jnp.dot(xa.astype(jnp.bfloat16), w1a_ref[...],
                preferred_element_type=jnp.float32) + b1a_ref[...])
    st = (jnp.dot(h.astype(jnp.bfloat16), w2a_ref[...],
                  preferred_element_type=jnp.float32) + b2a_ref[...])
    s = jnp.tanh(st[:, :HALF])                       # bounded log-scale
    t = st[:, HALF:]
    xb = xb * jnp.exp(s) + t
    ldj = jnp.sum(s, axis=-1, keepdims=True)

    # ---- coupling layer 2: condition on xb, transform xa -------------------
    h = jnp.tanh(
        jnp.dot(xb.astype(jnp.bfloat16), w1b_ref[...],
                preferred_element_type=jnp.float32) + b1b_ref[...])
    st = (jnp.dot(h.astype(jnp.bfloat16), w2b_ref[...],
                  preferred_element_type=jnp.float32) + b2b_ref[...])
    s = jnp.tanh(st[:, :HALF])
    t = st[:, HALF:]
    xa = xa * jnp.exp(s) + t
    ldj = ldj + jnp.sum(s, axis=-1, keepdims=True)

    # ---- write halves directly to the output (no lane concat) -------------
    phi_ref[:, :HALF] = xa
    phi_ref[:, HALF:] = xb
    phi = phi_ref[...]                               # (bm, D)

    # ---- target action: periodic phi^4 on the flattened lattice ------------
    phi_shift = jnp.roll(phi, shift=1, axis=1)       # periodic neighbour
    d = phi_shift - phi
    phi2 = phi * phi
    tgt = jnp.sum(0.5 * d * d + 0.5 * M2 * phi2 + LAM * phi2 * phi2,
                  axis=-1, keepdims=True)

    # ---- merged lane-dense stats: lane0=base, lane1=target, lane2=ldj ------
    nrow, nlane = stats_ref.shape
    lane = jax.lax.broadcasted_iota(jnp.int32, (nrow, nlane), 1)
    stats_ref[...] = jnp.where(
        lane == 0, base,
        jnp.where(lane == 1, tgt,
                  jnp.where(lane == 2, ldj, jnp.float32(0.0))))


def flow_forward_pallas(z, params, *, bm=256):
    """Run the flow + action kernel. z: (B, D) float32.

    Returns (phi, base, target, log_det_jacobian)."""
    B, d = z.shape
    assert d == D
    bm = min(bm, B)
    assert B % bm == 0

    w1a, b1a, w2a, b2a, w1b, b1b, w2b, b2b = params
    bf = lambda w: w.astype(jnp.bfloat16)            # MXU operands only

    full = lambda arr: pl.BlockSpec(arr.shape, lambda i: (0, 0))
    row_block = lambda width: pl.BlockSpec((bm, width), lambda i: (i, 0))

    out_shapes = (
        jax.ShapeDtypeStruct((B, D), jnp.float32),            # phi
        jax.ShapeDtypeStruct((B, STATS_LANES), jnp.float32),  # merged stats
    )

    phi, stats = pl.pallas_call(
        _flow_kernel,
        out_shape=out_shapes,
        grid=(B // bm,),
        in_specs=[
            row_block(D),                      # z
            full(w1a), full(b1a), full(w2a), full(b2a),
            full(w1b), full(b1b), full(w2b), full(b2b),
        ],
        out_specs=[row_block(D), row_block(STATS_LANES)],
        compiler_params=pltpu.CompilerParams(
            dimension_semantics=("parallel",),
            vmem_limit_bytes=32 * 1024 * 1024),
    )(z, bf(w1a), b1a, bf(w2a), b2a, bf(w1b), b1b, bf(w2b), b2b)

    base = stats[:, 0]
    tgt = stats[:, 1]
    ldj = stats[:, 2]
    return phi, base, tgt, ldj


# ---------------------------------------------------------------------------
# Model glue (parameters, sampling, forward)
# ---------------------------------------------------------------------------
def init_params(key):
    ks = jax.random.split(key, 4)
    scale = 0.05
    w1a = scale * jax.random.normal(ks[0], (HALF, HIDDEN), jnp.float32)
    b1a = jnp.zeros((1, HIDDEN), jnp.float32)
    w2a = scale * jax.random.normal(ks[1], (HIDDEN, D), jnp.float32)
    b2a = jnp.zeros((1, D), jnp.float32)
    w1b = scale * jax.random.normal(ks[2], (HALF, HIDDEN), jnp.float32)
    b1b = jnp.zeros((1, HIDDEN), jnp.float32)
    w2b = scale * jax.random.normal(ks[3], (HIDDEN, D), jnp.float32)
    b2b = jnp.zeros((1, D), jnp.float32)
    return (w1a, b1a, w2a, b2a, w1b, b1b, w2b, b2b)


def model_forward(key, batch_size, params, *, bm=128):
    """Mirrors Model.forward(batch_size) -> (Fields, Actions)."""
    # sample_base (random draw is glue; its action is computed in-kernel)
    z = jax.random.normal(key, (batch_size, D), jnp.float32)
    phi, base, tgt, ldj = flow_forward_pallas(z, params, bm=bm)
    push = base + ldj                                # pushforward
    pull = tgt - ldj                                 # pullback
    fields = Fields(inputs=z, outputs=phi)
    actions = Actions(base=base, target=tgt, pushforward=push, pullback=pull)
    return fields, actions


# ---------------------------------------------------------------------------
# Pure-JAX reference (for correctness checking only)
# ---------------------------------------------------------------------------
def reference_forward(z, params):
    w1a, b1a, w2a, b2a, w1b, b1b, w2b, b2b = params

    def mm(x, w):  # same bf16-operand / f32-accumulation matmul as the kernel
        return jnp.dot(x.astype(jnp.bfloat16), w.astype(jnp.bfloat16),
                       preferred_element_type=jnp.float32)

    xa, xb = z[:, :HALF], z[:, HALF:]
    base = 0.5 * jnp.sum(z * z, axis=-1) + 0.5 * D * jnp.log(2.0 * jnp.pi)

    h = jnp.tanh(mm(xa, w1a) + b1a)
    st = mm(h, w2a) + b2a
    s, t = jnp.tanh(st[:, :HALF]), st[:, HALF:]
    xb = xb * jnp.exp(s) + t
    ldj = jnp.sum(s, axis=-1)

    h = jnp.tanh(mm(xb, w1b) + b1b)
    st = mm(h, w2b) + b2b
    s, t = jnp.tanh(st[:, :HALF]), st[:, HALF:]
    xa = xa * jnp.exp(s) + t
    ldj = ldj + jnp.sum(s, axis=-1)

    phi = jnp.concatenate([xa, xb], axis=-1)
    phi_shift = jnp.roll(phi, 1, axis=-1)
    d = phi_shift - phi
    phi2 = phi * phi
    tgt = jnp.sum(0.5 * d * d + 0.5 * M2 * phi2 + LAM * phi2 * phi2, axis=-1)
    return phi, base, tgt, base + ldj, tgt - ldj


if __name__ == "__main__":
    key = jax.random.PRNGKey(0)
    pkey, zkey = jax.random.split(key)

    params = init_params(pkey)
    batch_size = 256          # bm=128 -> grid of 2 steps (uses both v7x TCs)

    fields, actions = model_forward(zkey, batch_size, params, bm=128)
    jax.block_until_ready(actions.pullback)

    # sanity check against pure-JAX reference
    phi_r, base_r, tgt_r, push_r, pull_r = reference_forward(
        fields.inputs, params)
    for got, want in [(fields.outputs, phi_r), (actions.base, base_r),
                      (actions.target, tgt_r),
                      (actions.pushforward, push_r),
                      (actions.pullback, pull_r)]:
        assert jnp.allclose(got, want, rtol=2e-3, atol=2e-3), "mismatch"

    print("KERNEL_OK")
</pallas_src>

<mosaic_0001>
module attributes {stable_mosaic.version = 11 : i64} {
  func.func @_flow_kernel(%arg0: i32, %arg1: memref<128x256xf32, #tpu.memory_space<vmem>>, %arg2: memref<128x128xbf16, #tpu.memory_space<vmem>>, %arg3: memref<1x128xf32, #tpu.memory_space<vmem>>, %arg4: memref<128x256xbf16, #tpu.memory_space<vmem>>, %arg5: memref<1x256xf32, #tpu.memory_space<vmem>>, %arg6: memref<128x128xbf16, #tpu.memory_space<vmem>>, %arg7: memref<1x128xf32, #tpu.memory_space<vmem>>, %arg8: memref<128x256xbf16, #tpu.memory_space<vmem>>, %arg9: memref<1x256xf32, #tpu.memory_space<vmem>>, %arg10: memref<128x256xf32, #tpu.memory_space<vmem>>, %arg11: memref<128x128xf32, #tpu.memory_space<vmem>>) attributes {dimension_semantics = [#tpu.dimension_semantics<parallel>], iteration_bounds = array<i64: 2>, scalar_prefetch = 0 : i64, scratch_operands = 0 : i64, tpu.core_type = #tpu.core_type<tc>, window_params = [{transform_indices = @transform_0, window_bounds = array<i64: 128, 256>}, {pipeline_mode = #tpu.pipeline_mode<synchronous>, transform_indices = @transform_1, window_bounds = array<i64: 128, 128>}, {pipeline_mode = #tpu.pipeline_mode<synchronous>, transform_indices = @transform_2, window_bounds = array<i64: 1, 128>}, {pipeline_mode = #tpu.pipeline_mode<synchronous>, transform_indices = @transform_3, window_bounds = array<i64: 128, 256>}, {pipeline_mode = #tpu.pipeline_mode<synchronous>, transform_indices = @transform_4, window_bounds = array<i64: 1, 256>}, {pipeline_mode = #tpu.pipeline_mode<synchronous>, transform_indices = @transform_5, window_bounds = array<i64: 128, 128>}, {pipeline_mode = #tpu.pipeline_mode<synchronous>, transform_indices = @transform_6, window_bounds = array<i64: 1, 128>}, {pipeline_mode = #tpu.pipeline_mode<synchronous>, transform_indices = @transform_7, window_bounds = array<i64: 128, 256>}, {pipeline_mode = #tpu.pipeline_mode<synchronous>, transform_indices = @transform_8, window_bounds = array<i64: 1, 256>}, {transform_indices = @transform_9, window_bounds = array<i64: 128, 256>}, {transform_indices = @transform_10, window_bounds = array<i64: 128, 128>}]} {
    %c0 = arith.constant 0 : index
    %c0_0 = arith.constant 0 : index
    %0 = vector.load %arg1[%c0, %c0_0] : memref<128x256xf32, #tpu.memory_space<vmem>>, vector<128x256xf32>
    %1 = vector.extract_strided_slice %0 {offsets = [0, 0], sizes = [128, 128], strides = [1, 1]} : vector<128x256xf32> to vector<128x128xf32>
    %2 = vector.extract_strided_slice %0 {offsets = [0, 128], sizes = [128, 128], strides = [1, 1]} : vector<128x256xf32> to vector<128x128xf32>
    %3 = arith.mulf %0, %0 : vector<128x256xf32>
    %cst = arith.constant dense<0.000000e+00> : vector<128xf32>
    %4 = vector.multi_reduction <add>, %3, %cst [1] : vector<128x256xf32> to vector<128xf32>
    %5 = vector.shape_cast %4 : vector<128xf32> to vector<128x1xf32>
    %cst_1 = arith.constant 5.000000e-01 : f32
    %6 = vector.broadcast %cst_1 : f32 to vector<128x1xf32>
    %7 = arith.mulf %6, %5 : vector<128x1xf32>
    %cst_2 = arith.constant 235.24826 : f32
    %8 = vector.broadcast %cst_2 : f32 to vector<128x1xf32>
    %9 = arith.addf %7, %8 : vector<128x1xf32>
    %10 = arith.truncf %1 : vector<128x128xf32> to vector<128x128xbf16>
    %c0_3 = arith.constant 0 : index
    %c0_4 = arith.constant 0 : index
    %11 = vector.load %arg2[%c0_3, %c0_4] : memref<128x128xbf16, #tpu.memory_space<vmem>>, vector<128x128xbf16>
    %cst_5 = arith.constant dense<0.000000e+00> : vector<128x128xf32>
    %12 = tpu.matmul %10, %11, %cst_5 {dimension_numbers = #tpu.dot_dimension_numbers<[1], [0], [0], [1], [0, 0, 1, 1], [], []>} : vector<128x128xbf16>, vector<128x128xbf16>, vector<128x128xf32> -> vector<128x128xf32>
    %c0_6 = arith.constant 0 : index
    %c0_7 = arith.constant 0 : index
    %13 = vector.load %arg3[%c0_6, %c0_7] : memref<1x128xf32, #tpu.memory_space<vmem>>, vector<1x128xf32>
    %14 = vector.broadcast %13 : vector<1x128xf32> to vector<128x128xf32>
    %15 = arith.addf %12, %14 : vector<128x128xf32>
    %16 = math.tanh %15 : vector<128x128xf32>
    %17 = arith.truncf %16 : vector<128x128xf32> to vector<128x128xbf16>
    %c0_8 = arith.constant 0 : index
    %c0_9 = arith.constant 0 : index
    %18 = vector.load %arg4[%c0_8, %c0_9] : memref<128x256xbf16, #tpu.memory_space<vmem>>, vector<128x256xbf16>
    %cst_10 = arith.constant dense<0.000000e+00> : vector<128x256xf32>
    %19 = tpu.matmul %17, %18, %cst_10 {dimension_numbers = #tpu.dot_dimension_numbers<[1], [0], [0], [1], [0, 0, 1, 1], [], []>} : vector<128x128xbf16>, vector<128x256xbf16>, vector<128x256xf32> -> vector<128x256xf32>
    %c0_11 = arith.constant 0 : index
    %c0_12 = arith.constant 0 : index
    %20 = vector.load %arg5[%c0_11, %c0_12] : memref<1x256xf32, #tpu.memory_space<vmem>>, vector<1x256xf32>
    %21 = vector.broadcast %20 : vector<1x256xf32> to vector<128x256xf32>
    %22 = arith.addf %19, %21 : vector<128x256xf32>
    %23 = vector.extract_strided_slice %22 {offsets = [0, 0], sizes = [128, 128], strides = [1, 1]} : vector<128x256xf32> to vector<128x128xf32>
    %24 = math.tanh %23 : vector<128x128xf32>
    %25 = vector.extract_strided_slice %22 {offsets = [0, 128], sizes = [128, 128], strides = [1, 1]} : vector<128x256xf32> to vector<128x128xf32>
    %26 = math.exp %24 : vector<128x128xf32>
    %27 = arith.mulf %2, %26 : vector<128x128xf32>
    %28 = arith.addf %27, %25 : vector<128x128xf32>
    %cst_13 = arith.constant dense<0.000000e+00> : vector<128xf32>
    %29 = vector.multi_reduction <add>, %24, %cst_13 [1] : vector<128x128xf32> to vector<128xf32>
    %30 = vector.shape_cast %29 : vector<128xf32> to vector<128x1xf32>
    %31 = arith.truncf %28 : vector<128x128xf32> to vector<128x128xbf16>
    %c0_14 = arith.constant 0 : index
    %c0_15 = arith.constant 0 : index
    %32 = vector.load %arg6[%c0_14, %c0_15] : memref<128x128xbf16, #tpu.memory_space<vmem>>, vector<128x128xbf16>
    %cst_16 = arith.constant dense<0.000000e+00> : vector<128x128xf32>
    %33 = tpu.matmul %31, %32, %cst_16 {dimension_numbers = #tpu.dot_dimension_numbers<[1], [0], [0], [1], [0, 0, 1, 1], [], []>} : vector<128x128xbf16>, vector<128x128xbf16>, vector<128x128xf32> -> vector<128x128xf32>
    %c0_17 = arith.constant 0 : index
    %c0_18 = arith.constant 0 : index
    %34 = vector.load %arg7[%c0_17, %c0_18] : memref<1x128xf32, #tpu.memory_space<vmem>>, vector<1x128xf32>
    %35 = vector.broadcast %34 : vector<1x128xf32> to vector<128x128xf32>
    %36 = arith.addf %33, %35 : vector<128x128xf32>
    %37 = math.tanh %36 : vector<128x128xf32>
    %38 = arith.truncf %37 : vector<128x128xf32> to vector<128x128xbf16>
    %c0_19 = arith.constant 0 : index
    %c0_20 = arith.constant 0 : index
    %39 = vector.load %arg8[%c0_19, %c0_20] : memref<128x256xbf16, #tpu.memory_space<vmem>>, vector<128x256xbf16>
    %cst_21 = arith.constant dense<0.000000e+00> : vector<128x256xf32>
    %40 = tpu.matmul %38, %39, %cst_21 {dimension_numbers = #tpu.dot_dimension_numbers<[1], [0], [0], [1], [0, 0, 1, 1], [], []>} : vector<128x128xbf16>, vector<128x256xbf16>, vector<128x256xf32> -> vector<128x256xf32>
    %c0_22 = arith.constant 0 : index
    %c0_23 = arith.constant 0 : index
    %41 = vector.load %arg9[%c0_22, %c0_23] : memref<1x256xf32, #tpu.memory_space<vmem>>, vector<1x256xf32>
    %42 = vector.broadcast %41 : vector<1x256xf32> to vector<128x256xf32>
    %43 = arith.addf %40, %42 : vector<128x256xf32>
    %44 = vector.extract_strided_slice %43 {offsets = [0, 0], sizes = [128, 128], strides = [1, 1]} : vector<128x256xf32> to vector<128x128xf32>
    %45 = math.tanh %44 : vector<128x128xf32>
    %46 = vector.extract_strided_slice %43 {offsets = [0, 128], sizes = [128, 128], strides = [1, 1]} : vector<128x256xf32> to vector<128x128xf32>
    %47 = math.exp %45 : vector<128x128xf32>
    %48 = arith.mulf %1, %47 : vector<128x128xf32>
    %49 = arith.addf %48, %46 : vector<128x128xf32>
    %cst_24 = arith.constant dense<0.000000e+00> : vector<128xf32>
    %50 = vector.multi_reduction <add>, %45, %cst_24 [1] : vector<128x128xf32> to vector<128xf32>
    %51 = vector.shape_cast %50 : vector<128xf32> to vector<128x1xf32>
    %52 = arith.addf %30, %51 : vector<128x1xf32>
    %c0_25 = arith.constant 0 : index
    %c0_26 = arith.constant 0 : index
    %53 = vector.load %arg10[%c0_25, %c0_26] : memref<128x256xf32, #tpu.memory_space<vmem>>, vector<128x128xf32>
    tpu.vector_store %arg10[%c0_25, %c0_26], %49 {strides = array<i32>} : memref<128x256xf32, #tpu.memory_space<vmem>>, vector<128x128xf32>,
    %c0_27 = arith.constant 0 : index
    %c128 = arith.constant 128 : index
    %54 = vector.load %arg10[%c0_27, %c128] : memref<128x256xf32, #tpu.memory_space<vmem>>, vector<128x128xf32>
    tpu.vector_store %arg10[%c0_27, %c128], %28 {strides = array<i32>} : memref<128x256xf32, #tpu.memory_space<vmem>>, vector<128x128xf32>,
    %c0_28 = arith.constant 0 : index
    %c0_29 = arith.constant 0 : index
    %55 = vector.load %arg10[%c0_28, %c0_29] : memref<128x256xf32, #tpu.memory_space<vmem>>, vector<128x256xf32>
    %56 = vector.extract_strided_slice %55 {offsets = [0, 255], sizes = [128, 1], strides = [1, 1]} : vector<128x256xf32> to vector<128x1xf32>
    %57 = vector.extract_strided_slice %55 {offsets = [0, 0], sizes = [128, 255], strides = [1, 1]} : vector<128x256xf32> to vector<128x255xf32>
    %58 = tpu.concatenate %56, %57 in 1 : vector<128x1xf32>, vector<128x255xf32> -> vector<128x256xf32>
    %59 = arith.subf %58, %55 : vector<128x256xf32>
    %60 = arith.mulf %55, %55 : vector<128x256xf32>
    %cst_30 = arith.constant 5.000000e-01 : f32
    %61 = vector.broadcast %cst_30 : f32 to vector<128x256xf32>
    %62 = arith.mulf %61, %59 : vector<128x256xf32>
    %63 = arith.mulf %62, %59 : vector<128x256xf32>
    %cst_31 = arith.constant 5.000000e-01 : f32
    %64 = vector.broadcast %cst_31 : f32 to vector<128x256xf32>
    %65 = arith.mulf %64, %60 : vector<128x256xf32>
    %66 = arith.addf %63, %65 : vector<128x256xf32>
    %cst_32 = arith.constant 5.000000e-01 : f32
    %67 = vector.broadcast %cst_32 : f32 to vector<128x256xf32>
    %68 = arith.mulf %67, %60 : vector<128x256xf32>
    %69 = arith.mulf %68, %60 : vector<128x256xf32>
    %70 = arith.addf %66, %69 : vector<128x256xf32>
    %cst_33 = arith.constant dense<0.000000e+00> : vector<128xf32>
    %71 = vector.multi_reduction <add>, %70, %cst_33 [1] : vector<128x256xf32> to vector<128xf32>
    %72 = vector.shape_cast %71 : vector<128xf32> to vector<128x1xf32>
    %73 = tpu.iota {dimensions = array<i32: 1>} : vector<128x128xi32>
    %c0_i32 = arith.constant 0 : i32
    %74 = vector.broadcast %c0_i32 : i32 to vector<128x128xi32>
    %75 = arith.cmpi eq, %73, %74 : vector<128x128xi32>
    %c1_i32 = arith.constant 1 : i32
    %76 = vector.broadcast %c1_i32 : i32 to vector<128x128xi32>
    %77 = arith.cmpi eq, %73, %76 : vector<128x128xi32>
    %c2_i32 = arith.constant 2 : i32
    %78 = vector.broadcast %c2_i32 : i32 to vector<128x128xi32>
    %79 = arith.cmpi eq, %73, %78 : vector<128x128xi32>
    %cst_34 = arith.constant 0.000000e+00 : f32
    %80 = vector.shape_cast %52 : vector<128x1xf32> to vector<128x1xf32>
    %81 = vector.broadcast %80 : vector<128x1xf32> to vector<128x128xf32>
    %82 = vector.broadcast %cst_34 : f32 to vector<128x128xf32>
    %83 = arith.select %79, %81, %82 : vector<128x128xi1>, vector<128x128xf32>
    %84 = vector.shape_cast %72 : vector<128x1xf32> to vector<128x1xf32>
    %85 = vector.broadcast %84 : vector<128x1xf32> to vector<128x128xf32>
    %86 = arith.select %77, %85, %83 : vector<128x128xi1>, vector<128x128xf32>
    %87 = vector.shape_cast %9 : vector<128x1xf32> to vector<128x1xf32>
    %88 = vector.broadcast %87 : vector<128x1xf32> to vector<128x128xf32>
    %89 = arith.select %75, %88, %86 : vector<128x128xi1>, vector<128x128xf32>
    %c0_35 = arith.constant 0 : index
    %c0_36 = arith.constant 0 : index
    %90 = vector.load %arg11[%c0_35, %c0_36] : memref<128x128xf32, #tpu.memory_space<vmem>>, vector<128x128xf32>
    tpu.vector_store %arg11[%c0_35, %c0_36], %89 {strides = array<i32>} : memref<128x128xf32, #tpu.memory_space<vmem>>, vector<128x128xf32>,
    return
  }
  func.func @transform_0(%arg0: i32) -> (i32, i32) {
    %c0_i32 = arith.constant 0 : i32
    %c0_i32_0 = arith.constant 0 : i32
    return %arg0, %c0_i32 : i32, i32
  }
  func.func @transform_1(%arg0: i32) -> (i32, i32) {
    %c0_i32 = arith.constant 0 : i32
    %c0_i32_0 = arith.constant 0 : i32
    %c0_i32_1 = arith.constant 0 : i32
    return %c0_i32, %c0_i32_0 : i32, i32
  }
  func.func @transform_2(%arg0: i32) -> (i32, i32) {
    %c0_i32 = arith.constant 0 : i32
    %c0_i32_0 = arith.constant 0 : i32
    %c0_i32_1 = arith.constant 0 : i32
    return %c0_i32, %c0_i32_0 : i32, i32
  }
  func.func @transform_3(%arg0: i32) -> (i32, i32) {
    %c0_i32 = arith.constant 0 : i32
    %c0_i32_0 = arith.constant 0 : i32
    %c0_i32_1 = arith.constant 0 : i32
    return %c0_i32, %c0_i32_0 : i32, i32
  }
  func.func @transform_4(%arg0: i32) -> (i32, i32) {
    %c0_i32 = arith.constant 0 : i32
    %c0_i32_0 = arith.constant 0 : i32
    %c0_i32_1 = arith.constant 0 : i32
    return %c0_i32, %c0_i32_0 : i32, i32
  }
  func.func @transform_5(%arg0: i32) -> (i32, i32) {
    %c0_i32 = arith.constant 0 : i32
    %c0_i32_0 = arith.constant 0 : i32
    %c0_i32_1 = arith.constant 0 : i32
    return %c0_i32, %c0_i32_0 : i32, i32
  }
  func.func @transform_6(%arg0: i32) -> (i32, i32) {
    %c0_i32 = arith.constant 0 : i32
    %c0_i32_0 = arith.constant 0 : i32
    %c0_i32_1 = arith.constant 0 : i32
    return %c0_i32, %c0_i32_0 : i32, i32
  }
  func.func @transform_7(%arg0: i32) -> (i32, i32) {
    %c0_i32 = arith.constant 0 : i32
    %c0_i32_0 = arith.constant 0 : i32
    %c0_i32_1 = arith.constant 0 : i32
    return %c0_i32, %c0_i32_0 : i32, i32
  }
  func.func @transform_8(%arg0: i32) -> (i32, i32) {
    %c0_i32 = arith.constant 0 : i32
    %c0_i32_0 = arith.constant 0 : i32
    %c0_i32_1 = arith.constant 0 : i32
    return %c0_i32, %c0_i32_0 : i32, i32
  }
  func.func @transform_9(%arg0: i32) -> (i32, i32) {
    %c0_i32 = arith.constant 0 : i32
    %c0_i32_0 = arith.constant 0 : i32
    return %arg0, %c0_i32 : i32, i32
  }
  func.func @transform_10(%arg0: i32) -> (i32, i32) {
    %c0_i32 = arith.constant 0 : i32
    %c0_i32_0 = arith.constant 0 : i32
    return %arg0, %c0_i32 : i32, i32
  }
}

</mosaic_0001>

<llo_original>
// kernel: tpu_custom_call.1
$region0: #{tpu_custom_call.1}
  #allocation0 [shape = 'u32[]', space=smem, size = 0x4, offset = 0x4, fixed_abs, tag = 'smem constant byte address 0x4 - core index']
  #allocation1 [shape = 'u32[144,128]{1,0:T(1,128)}', space=vmem, size = 0x12000, scoped, tag = 'internal scratch']
  %s0 = inlined_call_operand.hbm [shape: f32[256,256], index: 0, kind: input, shape index: {}]
  %s1 = inlined_call_operand.hbm [shape: bf16[128,128], index: 1, kind: input, shape index: {}]
  %s2 = inlined_call_operand.vmem [shape: f32[1,128], index: 2, kind: input, shape index: {}]
  %s3 = inlined_call_operand.hbm [shape: bf16[128,256], index: 3, kind: input, shape index: {}]
  %s4 = inlined_call_operand.vmem [shape: f32[1,256], index: 4, kind: input, shape index: {}]
  %s5 = inlined_call_operand.hbm [shape: bf16[128,128], index: 5, kind: input, shape index: {}]
  %s6 = inlined_call_operand.vmem [shape: f32[1,128], index: 6, kind: input, shape index: {}]
  %s7 = inlined_call_operand.hbm [shape: bf16[128,256], index: 7, kind: input, shape index: {}]
  %s8 = inlined_call_operand.vmem [shape: f32[1,256], index: 8, kind: input, shape index: {}]
  %s9 = inlined_call_operand.hbm [shape: f32[256,256], index: 9, kind: output, shape index: {0}]
  %s10 = inlined_call_operand.hbm [shape: f32[256,128], index: 10, kind: output, shape index: {1}]
  %11 = xla_tuple %s9, %s10
  %s12 = sld [smem:[#allocation0]]
  $region97: #{tpu_custom_call.1} parent=0
    _
  %s14 = ssub.s32 1, %s12
  %s15 = scalar_select 0, %s14, %s12
  $region1: #{tpu_custom_call.1} parent=0
    #allocation2 [shape = 'u8[262144]{0}', space=vmem, size = 0x40000, scoped, tag = 'input window, operand 0']
    #allocation3 [shape = 's32[2]{0}', space=sflag, size = 0x8, scoped, tag = 'scoped memory for tpu_custom_call.1']
    #allocation4 [shape = 's32[2]{0}', space=sflag, size = 0x8, scoped, tag = 'scoped memory for tpu_custom_call.1']
    #allocation5 [shape = 'u8[32768]{0}', space=vmem, size = 0x8000, scoped, tag = 'input window, operand 1, single buffered']
    #allocation6 [shape = 's32[1]{0}', space=sflag, size = 0x4, scoped, tag = 'scoped memory for tpu_custom_call.1']
    #allocation7 [shape = 'u8[65536]{0}', space=vmem, size = 0x10000, scoped, tag = 'input window, operand 3, single buffered']
    #allocation8 [shape = 'u8[32768]{0}', space=vmem, size = 0x8000, scoped, tag = 'input window, operand 5, single buffered']
    #allocation9 [shape = 's32[1]{0}', space=sflag, size = 0x4, scoped, tag = 'scoped memory for tpu_custom_call.1']
    #allocation10 [shape = 'u8[65536]{0}', space=vmem, size = 0x10000, scoped, tag = 'input window, operand 7, single buffered']
    #allocation11 [shape = 'u8[262144]{0}', space=vmem, size = 0x40000, scoped, tag = 'output window, operand 0']
    #allocation12 [shape = 'u8[131072]{0}', space=vmem, size = 0x20000, scoped, tag = 'output window, operand 1']
    #allocation13 [shape = 's32[2]{0}', space=sflag, size = 0x8, scoped, tag = 'scoped memory for tpu_custom_call.1']
    %16 = vsyncpa [#allocation3], 0
    %s17 = scalar_lea.sflag [#allocation3], 1
    %18 = vsyncpa %s17, 0
    %19 = vsyncpa [#allocation6], 0
    %20 = vsyncpa [#allocation9], 0
    %21 = vsyncpa [#allocation4], 0
    %s22 = scalar_lea.sflag [#allocation4], 1
    %23 = vsyncpa %s22, 0
    %24 = vsyncpa [#allocation13], 0
    %s25 = scalar_lea.sflag [#allocation13], 1
    %26 = vsyncpa %s25, 0
    loop: start=0, step=1, limit=4
    $region2: #{tpu_custom_call.1} parent=1 // loop_pre_header
      _
    $region3: #{tpu_custom_call.1} parent=1 // loop_header
      %s28 = sphi 0, %s32
      %p29 = scmp.ge.s32.totalorder %s28, 4
      %s38 = sphi 0, %s40
      %s41 = sphi 0, %s38
      %s42 = sphi 0, %s41
      %s58 = sphi 0, %s42
      %s62 = sphi 0, %s62
      %s64 = sphi 0, %s62
      %s65 = sphi 0, %s64
      %s79 = sphi 0, %s65
      %s83 = sphi 0, %s83
      %s85 = sphi 0, %s83
      %s86 = sphi 0, %s85
      %s100 = sphi 0, %s86
      %s104 = sphi 0, %s104
      %s106 = sphi 0, %s104
      %s107 = sphi 0, %s106
      %s121 = sphi 0, %s107
      %s125 = sphi 0, %s125
      %s127 = sphi 0, %s125
      %s128 = sphi 0, %s127
      %s142 = sphi 0, %s128
      %s146 = sphi 0, %s146
      %s148 = sphi 0, %s146
      %s149 = sphi 0, %s148
      %s163 = sphi 0, %s149
      %s167 = sphi 0, %s167
      %s169 = sphi 0, %s167
      %s170 = sphi 0, %s169
      %s184 = sphi 0, %s170
      %s188 = sphi 0, %s188
      %s190 = sphi 0, %s188
      %s191 = sphi 0, %s190
      %s205 = sphi 0, %s191
      %s209 = sphi 0, %s209
      %s211 = sphi 0, %s209
      %s212 = sphi 0, %s211
      %s226 = sphi 0, %s212
      %s232 = sphi 0, %s234
      %s235 = sphi 0, %s232
      %s236 = sphi 0, %s235
      %s252 = sphi 0, %s236
      %s258 = sphi 0, %s260
      %s261 = sphi 0, %s258
      %s262 = sphi 0, %s261
      %s278 = sphi 0, %s262
    $region4: #{tpu_custom_call.1} parent=1 // loop_header_branch
      %31 = sbr.rel (%p29) target = $region8
    $region5: #{tpu_custom_call.1} parent=1 // loop_body
      %s33 = ssub.s32 %s28, 1
      %s34 = ssub.s32 %s28, 2
      %s35 = sadd.s32 %s28, 1
      %s36 = ssub.s32 %s28, %s35
      %p37 = scmp.eq.s32.totalorder %s36, 0
      %s39 = sadd.s32 %s38, 1
      %s40 = scalar_select %p37, %s38, %s39
      %p43 = pneg %p37
      %p44 = scmp.eq.s32.totalorder %s28, 1
      %p45 = por %p43, %p44
      %p46 = scmp.ne.s32.totalorder %s38, %s41
      %p47 = scmp.eq.s32.totalorder %s28, 0
      %p48 = por %p46, %p47
      %p49 = scmp.ne.s32.totalorder %s38, %s41
      %p50 = scmp.eq.s32.totalorder %s33, 1
      %p51 = por %p49, %p50
      %p52 = scmp.ne.s32.totalorder %s41, %s42
      %p53 = scmp.eq.s32.totalorder %s33, 0
      %p54 = por %p52, %p53
      %p55 = scmp.ne.s32.totalorder %s41, %s42
      %p56 = scmp.eq.s32.totalorder %s34, 1
      %p57 = por %p55, %p56
      %p59 = scmp.ne.s32.totalorder %s42, %s58
      %p60 = scmp.eq.s32.totalorder %s34, 0
      %p61 = por %p59, %p60
      %s63 = sadd.s32 %s62, 1
      %p66 = scmp.eq.s32.totalorder %s28, 1
      %p67 = scmp.ne.s32.totalorder %s62, %s64
      %p68 = scmp.eq.s32.totalorder %s28, 0
      %p69 = por %p67, %p68
      %p70 = scmp.ne.s32.totalorder %s62, %s64
      %p71 = scmp.eq.s32.totalorder %s33, 1
      %p72 = por %p70, %p71
      %p73 = scmp.ne.s32.totalorder %s64, %s65
      %p74 = scmp.eq.s32.totalorder %s33, 0
      %p75 = por %p73, %p74
      %p76 = scmp.ne.s32.totalorder %s64, %s65
      %p77 = scmp.eq.s32.totalorder %s34, 1
      %p78 = por %p76, %p77
      %p80 = scmp.ne.s32.totalorder %s65, %s79
      %p81 = scmp.eq.s32.totalorder %s34, 0
      %p82 = por %p80, %p81
      %s84 = sadd.s32 %s83, 1
      %p87 = scmp.eq.s32.totalorder %s28, 1
      %p88 = scmp.ne.s32.totalorder %s83, %s85
      %p89 = scmp.eq.s32.totalorder %s28, 0
      %p90 = por %p88, %p89
      %p91 = scmp.ne.s32.totalorder %s83, %s85
      %p92 = scmp.eq.s32.totalorder %s33, 1
      %p93 = por %p91, %p92
      %p94 = scmp.ne.s32.totalorder %s85, %s86
      %p95 = scmp.eq.s32.totalorder %s33, 0
      %p96 = por %p94, %p95
      %p97 = scmp.ne.s32.totalorder %s85, %s86
      %p98 = scmp.eq.s32.totalorder %s34, 1
      %p99 = por %p97, %p98
      %p101 = scmp.ne.s32.totalorder %s86, %s100
      %p102 = scmp.eq.s32.totalorder %s34, 0
      %p103 = por %p101, %p102
      %s105 = sadd.s32 %s104, 1
      %p108 = scmp.eq.s32.totalorder %s28, 1
      %p109 = scmp.ne.s32.totalorder %s104, %s106
      %p110 = scmp.eq.s32.totalorder %s28, 0
      %p111 = por %p109, %p110
      %p112 = scmp.ne.s32.totalorder %s104, %s106
      %p113 = scmp.eq.s32.totalorder %s33, 1
      %p114 = por %p112, %p113
      %p115 = scmp.ne.s32.totalorder %s106, %s107
      %p116 = scmp.eq.s32.totalorder %s33, 0
      %p117 = por %p115, %p116
      %p118 = scmp.ne.s32.totalorder %s106, %s107
      %p119 = scmp.eq.s32.totalorder %s34, 1
      %p120 = por %p118, %p119
      %p122 = scmp.ne.s32.totalorder %s107, %s121
      %p123 = scmp.eq.s32.totalorder %s34, 0
      %p124 = por %p122, %p123
      %s126 = sadd.s32 %s125, 1
      %p129 = scmp.eq.s32.totalorder %s28, 1
      %p130 = scmp.ne.s32.totalorder %s125, %s127
      %p131 = scmp.eq.s32.totalorder %s28, 0
      %p132 = por %p130, %p131
      %p133 = scmp.ne.s32.totalorder %s125, %s127
      %p134 = scmp.eq.s32.totalorder %s33, 1
      %p135 = por %p133, %p134
      %p136 = scmp.ne.s32.totalorder %s127, %s128
      %p137 = scmp.eq.s32.totalorder %s33, 0
      %p138 = por %p136, %p137
      %p139 = scmp.ne.s32.totalorder %s127, %s128
      %p140 = scmp.eq.s32.totalorder %s34, 1
      %p141 = por %p139, %p140
      %p143 = scmp.ne.s32.totalorder %s128, %s142
      %p144 = scmp.eq.s32.totalorder %s34, 0
      %p145 = por %p143, %p144
      %s147 = sadd.s32 %s146, 1
      %p150 = scmp.eq.s32.totalorder %s28, 1
      %p151 = scmp.ne.s32.totalorder %s146, %s148
      %p152 = scmp.eq.s32.totalorder %s28, 0
      %p153 = por %p151, %p152
      %p154 = scmp.ne.s32.totalorder %s146, %s148
      %p155 = scmp.eq.s32.totalorder %s33, 1
      %p156 = por %p154, %p155
      %p157 = scmp.ne.s32.totalorder %s148, %s149
      %p158 = scmp.eq.s32.totalorder %s33, 0
      %p159 = por %p157, %p158
      %p160 = scmp.ne.s32.totalorder %s148, %s149
      %p161 = scmp.eq.s32.totalorder %s34, 1
      %p162 = por %p160, %p161
      %p164 = scmp.ne.s32.totalorder %s149, %s163
      %p165 = scmp.eq.s32.totalorder %s34, 0
      %p166 = por %p164, %p165
      %s168 = sadd.s32 %s167, 1
      %p171 = scmp.eq.s32.totalorder %s28, 1
      %p172 = scmp.ne.s32.totalorder %s167, %s169
      %p173 = scmp.eq.s32.totalorder %s28, 0
      %p174 = por %p172, %p173
      %p175 = scmp.ne.s32.totalorder %s167, %s169
      %p176 = scmp.eq.s32.totalorder %s33, 1
      %p177 = por %p175, %p176
      %p178 = scmp.ne.s32.totalorder %s169, %s170
      %p179 = scmp.eq.s32.totalorder %s33, 0
      %p180 = por %p178, %p179
      %p181 = scmp.ne.s32.totalorder %s169, %s170
      %p182 = scmp.eq.s32.totalorder %s34, 1
      %p183 = por %p181, %p182
      %p185 = scmp.ne.s32.totalorder %s170, %s184
      %p186 = scmp.eq.s32.totalorder %s34, 0
      %p187 = por %p185, %p186
      %s189 = sadd.s32 %s188, 1
      %p192 = scmp.eq.s32.totalorder %s28, 1
      %p193 = scmp.ne.s32.totalorder %s188, %s190
      %p194 = scmp.eq.s32.totalorder %s28, 0
      %p195 = por %p193, %p194
      %p196 = scmp.ne.s32.totalorder %s188, %s190
      %p197 = scmp.eq.s32.totalorder %s33, 1
      %p198 = por %p196, %p197
      %p199 = scmp.ne.s32.totalorder %s190, %s191
      %p200 = scmp.eq.s32.totalorder %s33, 0
      %p201 = por %p199, %p200
      %p202 = scmp.ne.s32.totalorder %s190, %s191
      %p203 = scmp.eq.s32.totalorder %s34, 1
      %p204 = por %p202, %p203
      %p206 = scmp.ne.s32.totalorder %s191, %s205
      %p207 = scmp.eq.s32.totalorder %s34, 0
      %p208 = por %p206, %p207
      %s210 = sadd.s32 %s209, 1
      %p213 = scmp.eq.s32.totalorder %s28, 1
      %p214 = scmp.ne.s32.totalorder %s209, %s211
      %p215 = scmp.eq.s32.totalorder %s28, 0
      %p216 = por %p214, %p215
      %p217 = scmp.ne.s32.totalorder %s209, %s211
      %p218 = scmp.eq.s32.totalorder %s33, 1
      %p219 = por %p217, %p218
      %p220 = scmp.ne.s32.totalorder %s211, %s212
      %p221 = scmp.eq.s32.totalorder %s33, 0
      %p222 = por %p220, %p221
      %p223 = scmp.ne.s32.totalorder %s211, %s212
      %p224 = scmp.eq.s32.totalorder %s34, 1
      %p225 = por %p223, %p224
      %p227 = scmp.ne.s32.totalorder %s212, %s226
      %p228 = scmp.eq.s32.totalorder %s34, 0
      %p229 = por %p227, %p228
      %s230 = ssub.s32 %s28, %s35
      %p231 = scmp.eq.s32.totalorder %s230, 0
      %s233 = sadd.s32 %s232, 1
      %s234 = scalar_select %p231, %s232, %s233
      %p237 = pneg %p231
      %p238 = scmp.eq.s32.totalorder %s28, 1
      %p239 = por %p237, %p238
      %p240 = scmp.ne.s32.totalorder %s232, %s235
      %p241 = scmp.eq.s32.totalorder %s28, 0
      %p242 = por %p240, %p241
      %p243 = scmp.ne.s32.totalorder %s232, %s235
      %p244 = scmp.eq.s32.totalorder %s33, 1
      %p245 = por %p243, %p244
      %p246 = scmp.ne.s32.totalorder %s235, %s236
      %p247 = scmp.eq.s32.totalorder %s33, 0
      %p248 = por %p246, %p247
      %p249 = scmp.ne.s32.totalorder %s235, %s236
      %p250 = scmp.eq.s32.totalorder %s34, 1
      %p251 = por %p249, %p250
      %p253 = scmp.ne.s32.totalorder %s236, %s252
      %p254 = scmp.eq.s32.totalorder %s34, 0
      %p255 = por %p253, %p254
      %s256 = ssub.s32 %s28, %s35
      %p257 = scmp.eq.s32.totalorder %s256, 0
      %s259 = sadd.s32 %s258, 1
      %s260 = scalar_select %p257, %s258, %s259
      %p263 = pneg %p257
      %p264 = scmp.eq.s32.totalorder %s28, 1
      %p265 = por %p263, %p264
      %p266 = scmp.ne.s32.totalorder %s258, %s261
      %p267 = scmp.eq.s32.totalorder %s28, 0
      %p268 = por %p266, %p267
      %p269 = scmp.ne.s32.totalorder %s258, %s261
      %p270 = scmp.eq.s32.totalorder %s33, 1
      %p271 = por %p269, %p270
      %p272 = scmp.ne.s32.totalorder %s261, %s262
      %p273 = scmp.eq.s32.totalorder %s33, 0
      %p274 = por %p272, %p273
      %p275 = scmp.ne.s32.totalorder %s261, %s262
      %p276 = scmp.eq.s32.totalorder %s34, 1
      %p277 = por %p275, %p276
      %p279 = scmp.ne.s32.totalorder %s262, %s278
      %p280 = scmp.eq.s32.totalorder %s34, 0
      %p281 = por %p279, %p280
      %p282 = scmp.le.s32.totalorder 1, %s28
      %p283 = scmp.lt.s32.totalorder %s28, 3
      %p284 = pnand %p282, %p283
      %p285 = pneg %p284
      // Predicated region
      $region9: #{tpu_custom_call.1} parent=5 // pred_check
        _
      $region10: #{tpu_custom_call.1} parent=5 // pred_check_branch
        %287 = sbr.rel (%p284) target = $region12
      $region11: #{tpu_custom_call.1} parent=5 // pred_region
        %s288 = ssub.s32 %s28, 1
        // Predicated region
        $region13: #{tpu_custom_call.1} parent=11 // pred_check
          %p289 = pneg %p75
        $region14: #{tpu_custom_call.1} parent=11 // pred_check_branch
          %291 = sbr.rel (%p289) target = $region16
        $region15: #{tpu_custom_call.1} parent=11 // pred_region
          %s293 = ssub.s32 1024, 1024
          %294 = vsyncadd [#allocation6], %s293
          %s295 = sshll.u32 [#allocation5], 4
          %s296 = int_to_ptr.vmem [resolvable:$true] %s295
          %301 = dma.hbm_to_vmem [thread:$0]  %s1, 1024, %s296, [#allocation6], 64, 64, 4
        $region16: #{tpu_custom_call.1} parent=11 // pred_fallthru
          _
        // Predicated region
        $region17: #{tpu_custom_call.1} parent=11 // pred_check
          %p302 = pneg %p96
        $region18: #{tpu_custom_call.1} parent=11 // pred_check_branch
          %304 = sbr.rel (%p302) target = $region20
        $region19: #{tpu_custom_call.1} parent=11 // pred_region
          _
        $region20: #{tpu_custom_call.1} parent=11 // pred_fallthru
          _
        // Predicated region
        $region21: #{tpu_custom_call.1} parent=11 // pred_check
          %p305 = pneg %p117
        $region22: #{tpu_custom_call.1} parent=11 // pred_check_branch
          %307 = sbr.rel (%p305) target = $region24
        $region23: #{tpu_custom_call.1} parent=11 // pred_region
          %s309 = ssub.s32 2048, 2048
          %310 = vsyncadd [#allocation6], %s309
          %s311 = sshll.u32 [#allocation7], 4
          %s312 = int_to_ptr.vmem [resolvable:$true] %s311
          %317 = dma.hbm_to_vmem [thread:$0]  %s3, 2048, %s312, [#allocation6], 128, 128, 8
        $region24: #{tpu_custom_call.1} parent=11 // pred_fallthru
          _
        // Predicated region
        $region25: #{tpu_custom_call.1} parent=11 // pred_check
          %p318 = pneg %p138
        $region26: #{tpu_custom_call.1} parent=11 // pred_check_branch
          %320 = sbr.rel (%p318) target = $region28
        $region27: #{tpu_custom_call.1} parent=11 // pred_region
          _
        $region28: #{tpu_custom_call.1} parent=11 // pred_fallthru
          _
        // Predicated region
        $region29: #{tpu_custom_call.1} parent=11 // pred_check
          %p321 = pneg %p159
        $region30: #{tpu_custom_call.1} parent=11 // pred_check_branch
          %323 = sbr.rel (%p321) target = $region32
        $region31: #{tpu_custom_call.1} parent=11 // pred_region
          %s325 = ssub.s32 1024, 1024
          %326 = vsyncadd [#allocation9], %s325
          %s327 = sshll.u32 [#allocation8], 4
          %s328 = int_to_ptr.vmem [resolvable:$true] %s327
          %333 = dma.hbm_to_vmem [thread:$0]  %s5, 1024, %s328, [#allocation9], 64, 64, 4
        $region32: #{tpu_custom_call.1} parent=11 // pred_fallthru
          _
        // Predicated region
        $region33: #{tpu_custom_call.1} parent=11 // pred_check
          %p334 = pneg %p180
        $region34: #{tpu_custom_call.1} parent=11 // pred_check_branch
          %336 = sbr.rel (%p334) target = $region36
        $region35: #{tpu_custom_call.1} parent=11 // pred_region
          _
        $region36: #{tpu_custom_call.1} parent=11 // pred_fallthru
          _
        // Predicated region
        $region37: #{tpu_custom_call.1} parent=11 // pred_check
          %p337 = pneg %p201
        $region38: #{tpu_custom_call.1} parent=11 // pred_check_branch
          %339 = sbr.rel (%p337) target = $region40
        $region39: #{tpu_custom_call.1} parent=11 // pred_region
          %s341 = ssub.s32 2048, 2048
          %342 = vsyncadd [#allocation9], %s341
          %s343 = sshll.u32 [#allocation10], 4
          %s344 = int_to_ptr.vmem [resolvable:$true] %s343
          %349 = dma.hbm_to_vmem [thread:$0]  %s7, 2048, %s344, [#allocation9], 128, 128, 8
        $region40: #{tpu_custom_call.1} parent=11 // pred_fallthru
          _
        // Predicated region
        $region41: #{tpu_custom_call.1} parent=11 // pred_check
          %p350 = pneg %p222
        $region42: #{tpu_custom_call.1} parent=11 // pred_check_branch
          %352 = sbr.rel (%p350) target = $region44
        $region43: #{tpu_custom_call.1} parent=11 // pred_region
          _
        $region44: #{tpu_custom_call.1} parent=11 // pred_fallthru
          _
      $region12: #{tpu_custom_call.1} parent=5 // pred_fallthru
        _
      %p353 = scmp.lt.s32.totalorder %s28, 2
      // Predicated region
      $region45: #{tpu_custom_call.1} parent=5 // pred_check
        %p354 = pneg %p353
      $region46: #{tpu_custom_call.1} parent=5 // pred_check_branch
        %356 = sbr.rel (%p354) target = $region48
      $region47: #{tpu_custom_call.1} parent=5 // pred_region
        // Predicated region
        $region49: #{tpu_custom_call.1} parent=47 // pred_check
          %p357 = pneg %p48
        $region50: #{tpu_custom_call.1} parent=47 // pred_check_branch
          %359 = sbr.rel (%p357) target = $region52
        $region51: #{tpu_custom_call.1} parent=47 // pred_region
          %s360 = sand.u32 %s38, 1
          %s361 = scalar_lea.sflag [#allocation3], %s360
          %s362 = sand.u32 %s38, 1
          %s363 = smul.addr %s362, 256
          %s364 = scalar_lea.vmem [#allocation2], %s363
          %s365 = smul.u32 16, %s28
          %s367 = ssub.s32 4096, 4096
          %368 = vsyncadd %s361, %s367
          %s369 = smul.addr %s365, 2
          %s370 = smul.addr %s369, 128
          %s371 = scalar_lea.hbm %s0, %s370
          %s372 = sshll.u32 %s364, 4
          %s373 = int_to_ptr.vmem [resolvable:$true] %s372
          %378 = dma.hbm_to_vmem [thread:$0]  %s371, 4096, %s373, %s361, 256, 256, 16
        $region52: #{tpu_custom_call.1} parent=47 // pred_fallthru
          _
      $region48: #{tpu_custom_call.1} parent=5 // pred_fallthru
        _
      %p379 = scmp.le.s32.totalorder 1, %s28
      %p380 = scmp.lt.s32.totalorder %s28, 3
      %p381 = pnand %p379, %p380
      %p382 = pneg %p381
      // Predicated region
      $region53: #{tpu_custom_call.1} parent=5 // pred_check
        _
      $region54: #{tpu_custom_call.1} parent=5 // pred_check_branch
        %384 = sbr.rel (%p381) target = $region56
      $region55: #{tpu_custom_call.1} parent=5 // pred_region
        %s385 = ssub.s32 %s28, 1
        %s386 = sand.u32 %s41, 1
        %s387 = scalar_lea.sflag [#allocation3], %s386
        %s388 = sand.u32 %s41, 1
        %s389 = smul.addr %s388, 256
        %s390 = scalar_lea.vmem [#allocation2], %s389
        // Predicated region
        $region57: #{tpu_custom_call.1} parent=55 // pred_check
          %p391 = pneg %p54
        $region58: #{tpu_custom_call.1} parent=55 // pred_check_branch
          %393 = sbr.rel (%p391) target = $region60
        $region59: #{tpu_custom_call.1} parent=55 // pred_region
          %394 = dma.done %s387, 4096
        $region60: #{tpu_custom_call.1} parent=55 // pred_fallthru
          _
        // Predicated region
        $region61: #{tpu_custom_call.1} parent=55 // pred_check
          %p395 = pneg %p75
        $region62: #{tpu_custom_call.1} parent=55 // pred_check_branch
          %397 = sbr.rel (%p395) target = $region64
        $region63: #{tpu_custom_call.1} parent=55 // pred_region
          %398 = dma.done [#allocation6], 1024
        $region64: #{tpu_custom_call.1} parent=55 // pred_fallthru
          _
        // Predicated region
        $region65: #{tpu_custom_call.1} parent=55 // pred_check
          %p399 = pneg %p117
        $region66: #{tpu_custom_call.1} parent=55 // pred_check_branch
          %401 = sbr.rel (%p399) target = $region68
        $region67: #{tpu_custom_call.1} parent=55 // pred_region
          %402 = dma.done [#allocation6], 2048
        $region68: #{tpu_custom_call.1} parent=55 // pred_fallthru
          _
        // Predicated region
        $region69: #{tpu_custom_call.1} parent=55 // pred_check
          %p403 = pneg %p159
        $region70: #{tpu_custom_call.1} parent=55 // pred_check_branch
          %405 = sbr.rel (%p403) target = $region72
        $region71: #{tpu_custom_call.1} parent=55 // pred_region
          %406 = dma.done [#allocation9], 1024
        $region72: #{tpu_custom_call.1} parent=55 // pred_fallthru
          _
        // Predicated region
        $region73: #{tpu_custom_call.1} parent=55 // pred_check
          %p407 = pneg %p201
        $region74: #{tpu_custom_call.1} parent=55 // pred_check_branch
          %409 = sbr.rel (%p407) target = $region76
        $region75: #{tpu_custom_call.1} parent=55 // pred_region
          %410 = dma.done [#allocation9], 2048
        $region76: #{tpu_custom_call.1} parent=55 // pred_fallthru
          _
        %s411 = sand.u32 %s41, 1
        %s412 = scalar_lea.sflag [#allocation3], %s411
        %s413 = sand.u32 %s41, 1
        %s414 = smul.addr %s413, 256
        %s415 = scalar_lea.vmem [#allocation2], %s414
        %p416 = pneg %p54
        %p417 = pneg %p51
        %p418 = pneg %p75
        %p419 = pneg %p72
        %p420 = pneg %p96
        %p421 = pneg %p93
        %p422 = pneg %p117
        %p423 = pneg %p114
        %p424 = pneg %p138
        %p425 = pneg %p135
        %p426 = pneg %p159
        %p427 = pneg %p156
        %p428 = pneg %p180
        %p429 = pneg %p177
        %p430 = pneg %p201
        %p431 = pneg %p198
        %p432 = pneg %p222
        %p433 = pneg %p219
        %p434 = pneg %p248
        %p435 = pneg %p245
        %s436 = sand.u32 %s235, 1
        %s437 = scalar_lea.sflag [#allocation4], %s436
        %s438 = sand.u32 %s235, 1
        %s439 = smul.addr %s438, 256
        %s440 = scalar_lea.vmem [#allocation11], %s439
        %p441 = pneg %p274
        %p442 = pneg %p271
        %s443 = sand.u32 %s261, 1
        %s444 = scalar_lea.sflag [#allocation13], %s443
        %s445 = sand.u32 %s261, 1
        %s446 = smul.addr %s445, 128
        %s447 = scalar_lea.vmem [#allocation12], %s446
        %s448 = smul.u32 16, %s33
        %s449 = smul.u32 16, %s33
        %s450 = smul.u32 16, %s33
        %v452 = vld [vmem:[%s390] sm:$0xff]
        %v453 = vld [vmem:[%s390 + $0x8] sm:$0xff]
        %v454 = vld [vmem:[%s390 + $0x10] sm:$0xff]
        %v455 = vld [vmem:[%s390 + $0x18] sm:$0xff]
        %v456 = vld [vmem:[%s390 + $0x20] sm:$0xff]
        %v457 = vld [vmem:[%s390 + $0x28] sm:$0xff]
        %v458 = vld [vmem:[%s390 + $0x30] sm:$0xff]
        %v459 = vld [vmem:[%s390 + $0x38] sm:$0xff]
        %v460 = vld [vmem:[%s390 + $0x40] sm:$0xff]
        %v461 = vld [vmem:[%s390 + $0x48] sm:$0xff]
        %v462 = vld [vmem:[%s390 + $0x50] sm:$0xff]
        %v463 = vld [vmem:[%s390 + $0x58] sm:$0xff]
        %v464 = vld [vmem:[%s390 + $0x60] sm:$0xff]
        %v465 = vld [vmem:[%s390 + $0x68] sm:$0xff]
        %v466 = vld [vmem:[%s390 + $0x70] sm:$0xff]
        %v467 = vld [vmem:[%s390 + $0x78] sm:$0xff]
        %v468 = vld [vmem:[%s390 + $0x80] sm:$0xff]
        %v469 = vld [vmem:[%s390 + $0x88] sm:$0xff]
        %v470 = vld [vmem:[%s390 + $0x90] sm:$0xff]
        %v471 = vld [vmem:[%s390 + $0x98] sm:$0xff]
        %v472 = vld [vmem:[%s390 + $0xa0] sm:$0xff]
        %v473 = vld [vmem:[%s390 + $0xa8] sm:$0xff]
        %v474 = vld [vmem:[%s390 + $0xb0] sm:$0xff]
        %v475 = vld [vmem:[%s390 + $0xb8] sm:$0xff]
        %v476 = vld [vmem:[%s390 + $0xc0] sm:$0xff]
        %v477 = vld [vmem:[%s390 + $0xc8] sm:$0xff]
        %v478 = vld [vmem:[%s390 + $0xd0] sm:$0xff]
        %v479 = vld [vmem:[%s390 + $0xd8] sm:$0xff]
        %v480 = vld [vmem:[%s390 + $0xe0] sm:$0xff]
        %v481 = vld [vmem:[%s390 + $0xe8] sm:$0xff]
        %v482 = vld [vmem:[%s390 + $0xf0] sm:$0xff]
        %v483 = vld [vmem:[%s390 + $0xf8] sm:$0xff]
        %v484 = vmul.f32 %v452, %v452
        %v485 = vmul.f32 %v453, %v453
        %v486 = vmul.f32 %v454, %v454
        %v487 = vmul.f32 %v455, %v455
        %v488 = vmul.f32 %v456, %v456
        %v489 = vmul.f32 %v457, %v457
        %v490 = vmul.f32 %v458, %v458
        %v491 = vmul.f32 %v459, %v459
        %v492 = vmul.f32 %v460, %v460
        %v493 = vmul.f32 %v461, %v461
        %v494 = vmul.f32 %v462, %v462
        %v495 = vmul.f32 %v463, %v463
        %v496 = vmul.f32 %v464, %v464
        %v497 = vmul.f32 %v465, %v465
        %v498 = vmul.f32 %v466, %v466
        %v499 = vmul.f32 %v467, %v467
        %v500 = vmul.f32 %v468, %v468
        %v501 = vmul.f32 %v469, %v469
        %v502 = vmul.f32 %v470, %v470
        %v503 = vmul.f32 %v471, %v471
        %v504 = vmul.f32 %v472, %v472
        %v505 = vmul.f32 %v473, %v473
        %v506 = vmul.f32 %v474, %v474
        %v507 = vmul.f32 %v475, %v475
        %v508 = vmul.f32 %v476, %v476
        %v509 = vmul.f32 %v477, %v477
        %v510 = vmul.f32 %v478, %v478
        %v511 = vmul.f32 %v479, %v479
        %v512 = vmul.f32 %v480, %v480
        %v513 = vmul.f32 %v481, %v481
        %v514 = vmul.f32 %v482, %v482
        %v515 = vmul.f32 %v483, %v483
        %v516 = vadd.f32 %v484, %v485
        %517 = vadd.xlane.f32.xlu0 %v516
        %v518 = vpop.xlane.xlu0 %517
        %v519 = vadd.f32 %v486, %v487
        %520 = vadd.xlane.f32.xlu0 %v519
        %v521 = vpop.xlane.xlu0 %520
        %v522 = vadd.f32 %v488, %v489
        %523 = vadd.xlane.f32.xlu0 %v522
        %v524 = vpop.xlane.xlu0 %523
        %v525 = vadd.f32 %v490, %v491
        %526 = vadd.xlane.f32.xlu0 %v525
        %v527 = vpop.xlane.xlu0 %526
        %v528 = vadd.f32 %v492, %v493
        %529 = vadd.xlane.f32.xlu0 %v528
        %v530 = vpop.xlane.xlu0 %529
        %v531 = vadd.f32 %v494, %v495
        %532 = vadd.xlane.f32.xlu0 %v531
        %v533 = vpop.xlane.xlu0 %532
        %v534 = vadd.f32 %v496, %v497
        %535 = vadd.xlane.f32.xlu0 %v534
        %v536 = vpop.xlane.xlu0 %535
        %v537 = vadd.f32 %v498, %v499
        %538 = vadd.xlane.f32.xlu0 %v537
        %v539 = vpop.xlane.xlu0 %538
        %v540 = vadd.f32 %v500, %v501
        %541 = vadd.xlane.f32.xlu0 %v540
        %v542 = vpop.xlane.xlu0 %541
        %v543 = vadd.f32 %v502, %v503
        %544 = vadd.xlane.f32.xlu0 %v543
        %v545 = vpop.xlane.xlu0 %544
        %v546 = vadd.f32 %v504, %v505
        %547 = vadd.xlane.f32.xlu0 %v546
        %v548 = vpop.xlane.xlu0 %547
        %v549 = vadd.f32 %v506, %v507
        %550 = vadd.xlane.f32.xlu0 %v549
        %v551 = vpop.xlane.xlu0 %550
        %v552 = vadd.f32 %v508, %v509
        %553 = vadd.xlane.f32.xlu0 %v552
        %v554 = vpop.xlane.xlu0 %553
        %v555 = vadd.f32 %v510, %v511
        %556 = vadd.xlane.f32.xlu0 %v555
        %v557 = vpop.xlane.xlu0 %556
        %v558 = vadd.f32 %v512, %v513
        %559 = vadd.xlane.f32.xlu0 %v558
        %v560 = vpop.xlane.xlu0 %559
        %v561 = vadd.f32 %v514, %v515
        %562 = vadd.xlane.f32.xlu0 %v561
        %v563 = vpop.xlane.xlu0 %562
        %v564 = vmul.f32 %v518, 0.5
        %v565 = vmul.f32 %v521, 0.5
        %v566 = vmul.f32 %v524, 0.5
        %v567 = vmul.f32 %v527, 0.5
        %v568 = vmul.f32 %v530, 0.5
        %v569 = vmul.f32 %v533, 0.5
        %v570 = vmul.f32 %v536, 0.5
        %v571 = vmul.f32 %v539, 0.5
        %v572 = vmul.f32 %v542, 0.5
        %v573 = vmul.f32 %v545, 0.5
        %v574 = vmul.f32 %v548, 0.5
        %v575 = vmul.f32 %v551, 0.5
        %v576 = vmul.f32 %v554, 0.5
        %v577 = vmul.f32 %v557, 0.5
        %v578 = vmul.f32 %v560, 0.5
        %v579 = vmul.f32 %v563, 0.5
        %v580 = vadd.f32 %v564, 235.24826
        %v581 = vadd.f32 %v565, 235.24826
        %v582 = vadd.f32 %v566, 235.24826
        %v583 = vadd.f32 %v567, 235.24826
        %v584 = vadd.f32 %v568, 235.24826
        %v585 = vadd.f32 %v569, 235.24826
        %v586 = vadd.f32 %v570, 235.24826
        %v587 = vadd.f32 %v571, 235.24826
        %v588 = vadd.f32 %v572, 235.24826
        %v589 = vadd.f32 %v573, 235.24826
        %v590 = vadd.f32 %v574, 235.24826
        %v591 = vadd.f32 %v575, 235.24826
        %v592 = vadd.f32 %v576, 235.24826
        %v593 = vadd.f32 %v577, 235.24826
        %v594 = vadd.f32 %v578, 235.24826
        %v595 = vadd.f32 %v579, 235.24826
        %v596 = vpack.c.bf16 %v454, %v452
        %v597 = vpack.c.bf16 %v458, %v456
        %v598 = vpack.c.bf16 %v462, %v460
        %v599 = vpack.c.bf16 %v466, %v464
        %v600 = vpack.c.bf16 %v470, %v468
        %v601 = vpack.c.bf16 %v474, %v472
        %v602 = vpack.c.bf16 %v478, %v476
        %v603 = vpack.c.bf16 %v482, %v480
        %v604 = vld [vmem:[#allocation5] sm:$0xf]
        %v605 = vld [vmem:[#allocation5 + $0x4] sm:$0xf]
        %v606 = vld [vmem:[#allocation5 + $0x8] sm:$0xf]
        %v607 = vld [vmem:[#allocation5 + $0xc] sm:$0xf]
        %v608 = vld [vmem:[#allocation5 + $0x10] sm:$0xf]
        %v609 = vld [vmem:[#allocation5 + $0x14] sm:$0xf]
        %v610 = vld [vmem:[#allocation5 + $0x18] sm:$0xf]
        %v611 = vld [vmem:[#allocation5 + $0x1c] sm:$0xf]
        %v612 = vld [vmem:[#allocation5 + $0x20] sm:$0xf]
        %v613 = vld [vmem:[#allocation5 + $0x24] sm:$0xf]
        %v614 = vld [vmem:[#allocation5 + $0x28] sm:$0xf]
        %v615 = vld [vmem:[#allocation5 + $0x2c] sm:$0xf]
        %v616 = vld [vmem:[#allocation5 + $0x30] sm:$0xf]
        %v617 = vld [vmem:[#allocation5 + $0x34] sm:$0xf]
        %v618 = vld [vmem:[#allocation5 + $0x38] sm:$0xf]
        %v619 = vld [vmem:[#allocation5 + $0x3c] sm:$0xf]
        %v620 = vld [vmem:[%s2] sm:$0x1]
        %v622 = vlaneseq
        %v623 = vshrl.u32 %v622, 7
        %v624 = vsub.s32 0, %v623
        %v625 = vrot.slane %v620, %v624
        %v643 = vunpack.c.l.b16 %v604
        %v644 = vunpack.c.l.b16 %v605
        %v645 = vunpack.c.l.b16 %v606
        %v646 = vunpack.c.l.b16 %v607
        %v647 = vunpack.c.l.b16 %v608
        %v648 = vunpack.c.l.b16 %v609
        %v649 = vunpack.c.l.b16 %v610
        %v650 = vunpack.c.l.b16 %v611
        %v651 = vunpack.c.l.b16 %v612
        %v652 = vunpack.c.l.b16 %v613
        %v653 = vunpack.c.l.b16 %v614
        %v654 = vunpack.c.l.b16 %v615
        %v655 = vunpack.c.l.b16 %v616
        %v656 = vunpack.c.l.b16 %v617
        %v657 = vunpack.c.l.b16 %v618
        %v658 = vunpack.c.l.b16 %v619
        %v659 = vpack.c.b16 %v644, %v643
        %v660 = vpack.c.b16 %v646, %v645
        %v661 = vpack.c.b16 %v648, %v647
        %v662 = vpack.c.b16 %v650, %v649
        %v663 = vpack.c.b16 %v652, %v651
        %v664 = vpack.c.b16 %v654, %v653
        %v665 = vpack.c.b16 %v656, %v655
        %v666 = vpack.c.b16 %v658, %v657
        %675 = vmatprep.subr.bf16.mxu0 0
        %676 = vmatpush1.bf16.msra.mxu0 %v666
        %677 = vmatprep.subr.bf16.mxu0 0
        %678 = vmatpush1.bf16.msra.mxu0 %v665
        %679 = vmatprep.subr.bf16.mxu0 0
        %680 = vmatpush1.bf16.msra.mxu0 %v664
        %681 = vmatprep.subr.bf16.mxu0 0
        %682 = vmatpush1.bf16.msra.mxu0 %v663
        %683 = vmatprep.subr.bf16.mxu0 0
        %684 = vmatpush1.bf16.msra.mxu0 %v662
        %685 = vmatprep.subr.bf16.mxu0 0
        %686 = vmatpush1.bf16.msra.mxu0 %v661
        %687 = vmatprep.subr.bf16.mxu0 0
        %688 = vmatpush1.bf16.msra.mxu0 %v660
        %689 = vmatprep.subr.bf16.mxu0 0
        %690 = vmatpush1.bf16.msra.mxu0 %v659
        %691 = vmatprep.subr.bf16.mxu0 0
        %692 = vmatpush2.bf16.msra.mxu0 0
        %693 = vmatprep.subr.bf16.mxu0 0
        %694 = vmatpush2.bf16.msra.mxu0 0
        %695 = vmatprep.subr.bf16.mxu0 0
        %696 = vmatpush2.bf16.msra.mxu0 0
        %697 = vmatprep.subr.bf16.mxu0 0
        %698 = vmatpush2.bf16.msra.mxu0 0
        %699 = vmatprep.subr.bf16.mxu0 0
        %700 = vmatpush2.bf16.msra.mxu0 0
        %701 = vmatprep.subr.bf16.mxu0 0
        %702 = vmatpush2.bf16.msra.mxu0 0
        %703 = vmatprep.subr.bf16.mxu0 0
        %704 = vmatpush2.bf16.msra.mxu0 0
        %705 = vmatprep.subr.bf16.mxu0 0
        %706 = vmatpush2.bf16.msra.mxu0 0
        %707 = vmatprep.mubr.bf16.mxu0 0
        %708 = vmatmul.mubr.bf16.gmra.mxu0 %v596
        %v709 = vpop.f32.mrf.mxu0
        %v710 = vadd.f32 %v625, %v709
        %v711 = vpop.f32.mrf.mxu0
        %v712 = vpop.f32.mrf.mxu0
        %v713 = vadd.f32 %v625, %v712
        %v714 = vpop.f32.mrf.mxu0
        %715 = vmatprep.mubr.bf16.mxu0 0
        %716 = vmatmul.mubr.bf16.gmra.mxu0 %v597
        %v717 = vpop.f32.mrf.mxu0
        %v718 = vadd.f32 %v625, %v717
        %v719 = vpop.f32.mrf.mxu0
        %v720 = vpop.f32.mrf.mxu0
        %v721 = vadd.f32 %v625, %v720
        %v722 = vpop.f32.mrf.mxu0
        %723 = vmatprep.mubr.bf16.mxu0 0
        %724 = vmatmul.mubr.bf16.gmra.mxu0 %v598
        %v725 = vpop.f32.mrf.mxu0
        %v726 = vadd.f32 %v625, %v725
        %v727 = vpop.f32.mrf.mxu0
        %v728 = vpop.f32.mrf.mxu0
        %v729 = vadd.f32 %v625, %v728
        %v730 = vpop.f32.mrf.mxu0
        %731 = vmatprep.mubr.bf16.mxu0 0
        %732 = vmatmul.mubr.bf16.gmra.mxu0 %v599
        %v733 = vpop.f32.mrf.mxu0
        %v734 = vadd.f32 %v625, %v733
        %v735 = vpop.f32.mrf.mxu0
        %v736 = vpop.f32.mrf.mxu0
        %v737 = vadd.f32 %v625, %v736
        %v738 = vpop.f32.mrf.mxu0
        %739 = vmatprep.mubr.bf16.mxu0 0
        %740 = vmatmul.mubr.bf16.gmra.mxu0 %v600
        %v741 = vpop.f32.mrf.mxu0
        %v742 = vadd.f32 %v625, %v741
        %v743 = vpop.f32.mrf.mxu0
        %v744 = vpop.f32.mrf.mxu0
        %v745 = vadd.f32 %v625, %v744
        %v746 = vpop.f32.mrf.mxu0
        %747 = vmatprep.mubr.bf16.mxu0 0
        %748 = vmatmul.mubr.bf16.gmra.mxu0 %v601
        %v749 = vpop.f32.mrf.mxu0
        %v750 = vadd.f32 %v625, %v749
        %v751 = vpop.f32.mrf.mxu0
        %v752 = vpop.f32.mrf.mxu0
        %v753 = vadd.f32 %v625, %v752
        %v754 = vpop.f32.mrf.mxu0
        %755 = vmatprep.mubr.bf16.mxu0 0
        %756 = vmatmul.mubr.bf16.gmra.mxu0 %v602
        %v757 = vpop.f32.mrf.mxu0
        %v758 = vadd.f32 %v625, %v757
        %v759 = vpop.f32.mrf.mxu0
        %v760 = vpop.f32.mrf.mxu0
        %v761 = vadd.f32 %v625, %v760
        %v762 = vpop.f32.mrf.mxu0
        %763 = vmatprep.mubr.bf16.mxu0 0
        %764 = vmatmul.mubr.bf16.gmra.mxu0 %v603
        %v765 = vpop.f32.mrf.mxu0
        %v766 = vadd.f32 %v625, %v765
        %v767 = vpop.f32.mrf.mxu0
        %v768 = vpop.f32.mrf.mxu0
        %v769 = vadd.f32 %v625, %v768
        %v770 = vpop.f32.mrf.mxu0
        %771 = vdwg.mxu0
        %v772 = vtanh.pop %v710
        %v773 = vtanh.pop %v713
        %v774 = vtanh.pop %v718
        %v775 = vtanh.pop %v721
        %v776 = vtanh.pop %v726
        %v777 = vtanh.pop %v729
        %v778 = vtanh.pop %v734
        %v779 = vtanh.pop %v737
        %v780 = vtanh.pop %v742
        %v781 = vtanh.pop %v745
        %v782 = vtanh.pop %v750
        %v783 = vtanh.pop %v753
        %v784 = vtanh.pop %v758
        %v785 = vtanh.pop %v761
        %v786 = vtanh.pop %v766
        %v787 = vtanh.pop %v769
        %v788 = vpack.c.bf16 %v773, %v772
        %v789 = vpack.c.bf16 %v775, %v774
        %v790 = vpack.c.bf16 %v777, %v776
        %v791 = vpack.c.bf16 %v779, %v778
        %v792 = vpack.c.bf16 %v781, %v780
        %v793 = vpack.c.bf16 %v783, %v782
        %v794 = vpack.c.bf16 %v785, %v784
        %v795 = vpack.c.bf16 %v787, %v786
        %v796 = vld [vmem:[#allocation7] sm:$0xff]
        %v797 = vld [vmem:[#allocation7 + $0x8] sm:$0xff]
        %v798 = vld [vmem:[#allocation7 + $0x10] sm:$0xff]
        %v799 = vld [vmem:[#allocation7 + $0x18] sm:$0xff]
        %v800 = vld [vmem:[#allocation7 + $0x20] sm:$0xff]
        %v801 = vld [vmem:[#allocation7 + $0x28] sm:$0xff]
        %v802 = vld [vmem:[#allocation7 + $0x30] sm:$0xff]
        %v803 = vld [vmem:[#allocation7 + $0x38] sm:$0xff]
        %v804 = vld [vmem:[#allocation7 + $0x40] sm:$0xff]
        %v805 = vld [vmem:[#allocation7 + $0x48] sm:$0xff]
        %v806 = vld [vmem:[#allocation7 + $0x50] sm:$0xff]
        %v807 = vld [vmem:[#allocation7 + $0x58] sm:$0xff]
        %v808 = vld [vmem:[#allocation7 + $0x60] sm:$0xff]
        %v809 = vld [vmem:[#allocation7 + $0x68] sm:$0xff]
        %v810 = vld [vmem:[#allocation7 + $0x70] sm:$0xff]
        %v811 = vld [vmem:[#allocation7 + $0x78] sm:$0xff]
        %v812 = vld [vmem:[%s4] sm:$0x3]
        %v814 = vlaneseq
        %v815 = vshrl.u32 %v814, 7
        %v816 = vsub.s32 0, %v815
        %v817 = vrot.slane %v812, %v816
        %v818 = vlaneseq
        %v819 = vshrl.u32 %v818, 7
        %v820 = vsub.s32 1, %v819
        %v821 = vrot.slane %v812, %v820
        %v840 = vunpack.c.l.b16 %v796
        %v841 = vunpack.c.h.b16 %v796
        %v842 = vunpack.c.l.b16 %v797
        %v843 = vunpack.c.h.b16 %v797
        %v844 = vunpack.c.l.b16 %v798
        %v845 = vunpack.c.h.b16 %v798
        %v846 = vunpack.c.l.b16 %v799
        %v847 = vunpack.c.h.b16 %v799
        %v848 = vunpack.c.l.b16 %v800
        %v849 = vunpack.c.h.b16 %v800
        %v850 = vunpack.c.l.b16 %v801
        %v851 = vunpack.c.h.b16 %v801
        %v852 = vunpack.c.l.b16 %v802
        %v853 = vunpack.c.h.b16 %v802
        %v854 = vunpack.c.l.b16 %v803
        %v855 = vunpack.c.h.b16 %v803
        %v856 = vunpack.c.l.b16 %v804
        %v857 = vunpack.c.h.b16 %v804
        %v858 = vunpack.c.l.b16 %v805
        %v859 = vunpack.c.h.b16 %v805
        %v860 = vunpack.c.l.b16 %v806
        %v861 = vunpack.c.h.b16 %v806
        %v862 = vunpack.c.l.b16 %v807
        %v863 = vunpack.c.h.b16 %v807
        %v864 = vunpack.c.l.b16 %v808
        %v865 = vunpack.c.h.b16 %v808
        %v866 = vunpack.c.l.b16 %v809
        %v867 = vunpack.c.h.b16 %v809
        %v868 = vunpack.c.l.b16 %v810
        %v869 = vunpack.c.h.b16 %v810
        %v870 = vunpack.c.l.b16 %v811
        %v871 = vunpack.c.h.b16 %v811
        %v872 = vpack.c.b16 %v842, %v840
        %v873 = vpack.c.b16 %v843, %v841
        %v874 = vpack.c.b16 %v846, %v844
        %v875 = vpack.c.b16 %v847, %v845
        %v876 = vpack.c.b16 %v850, %v848
        %v877 = vpack.c.b16 %v851, %v849
        %v878 = vpack.c.b16 %v854, %v852
        %v879 = vpack.c.b16 %v855, %v853
        %v880 = vpack.c.b16 %v858, %v856
        %v881 = vpack.c.b16 %v859, %v857
        %v882 = vpack.c.b16 %v862, %v860
        %v883 = vpack.c.b16 %v863, %v861
        %v884 = vpack.c.b16 %v866, %v864
        %v885 = vpack.c.b16 %v867, %v865
        %v886 = vpack.c.b16 %v870, %v868
        %v887 = vpack.c.b16 %v871, %v869
        %904 = vmatprep.subr.bf16.mxu0 %v887
        %905 = vmatpush1.bf16.msra.mxu0 %v886
        %906 = vmatprep.subr.bf16.mxu0 %v885
        %907 = vmatpush1.bf16.msra.mxu0 %v884
        %908 = vmatprep.subr.bf16.mxu0 %v883
        %909 = vmatpush1.bf16.msra.mxu0 %v882
        %910 = vmatprep.subr.bf16.mxu0 %v881
        %911 = vmatpush1.bf16.msra.mxu0 %v880
        %912 = vmatprep.subr.bf16.mxu0 %v879
        %913 = vmatpush1.bf16.msra.mxu0 %v878
        %914 = vmatprep.subr.bf16.mxu0 %v877
        %915 = vmatpush1.bf16.msra.mxu0 %v876
        %916 = vmatprep.subr.bf16.mxu0 %v875
        %917 = vmatpush1.bf16.msra.mxu0 %v874
        %918 = vmatprep.subr.bf16.mxu0 %v873
        %919 = vmatpush1.bf16.msra.mxu0 %v872
        %920 = vmatprep.subr.bf16.mxu0 0
        %921 = vmatpush2.bf16.msra.mxu0 0
        %922 = vmatprep.subr.bf16.mxu0 0
        %923 = vmatpush2.bf16.msra.mxu0 0
        %924 = vmatprep.subr.bf16.mxu0 0
        %925 = vmatpush2.bf16.msra.mxu0 0
        %926 = vmatprep.subr.bf16.mxu0 0
        %927 = vmatpush2.bf16.msra.mxu0 0
        %928 = vmatprep.subr.bf16.mxu0 0
        %929 = vmatpush2.bf16.msra.mxu0 0
        %930 = vmatprep.subr.bf16.mxu0 0
        %931 = vmatpush2.bf16.msra.mxu0 0
        %932 = vmatprep.subr.bf16.mxu0 0
        %933 = vmatpush2.bf16.msra.mxu0 0
        %934 = vmatprep.subr.bf16.mxu0 0
        %935 = vmatpush2.bf16.msra.mxu0 0
        %936 = vmatprep.mubr.bf16.mxu0 0
        %937 = vmatmul.mubr.bf16.gmra.mxu0 %v788
        %v938 = vpop.f32.mrf.mxu0
        %v939 = vadd.f32 %v817, %v938
        %v940 = vpop.f32.mrf.mxu0
        %v941 = vadd.f32 %v821, %v940
        %v942 = vpop.f32.mrf.mxu0
        %v943 = vadd.f32 %v817, %v942
        %v944 = vpop.f32.mrf.mxu0
        %v945 = vadd.f32 %v821, %v944
        %946 = vmatprep.mubr.bf16.mxu0 0
        %947 = vmatmul.mubr.bf16.gmra.mxu0 %v789
        %v948 = vpop.f32.mrf.mxu0
        %v949 = vadd.f32 %v817, %v948
        %v950 = vpop.f32.mrf.mxu0
        %v951 = vadd.f32 %v821, %v950
        %v952 = vpop.f32.mrf.mxu0
        %v953 = vadd.f32 %v817, %v952
        %v954 = vpop.f32.mrf.mxu0
        %v955 = vadd.f32 %v821, %v954
        %956 = vmatprep.mubr.bf16.mxu0 0
        %957 = vmatmul.mubr.bf16.gmra.mxu0 %v790
        %v958 = vpop.f32.mrf.mxu0
        %v959 = vadd.f32 %v817, %v958
        %v960 = vpop.f32.mrf.mxu0
        %v961 = vadd.f32 %v821, %v960
        %v962 = vpop.f32.mrf.mxu0
        %v963 = vadd.f32 %v817, %v962
        %v964 = vpop.f32.mrf.mxu0
        %v965 = vadd.f32 %v821, %v964
        %966 = vmatprep.mubr.bf16.mxu0 0
        %967 = vmatmul.mubr.bf16.gmra.mxu0 %v791
        %v968 = vpop.f32.mrf.mxu0
        %v969 = vadd.f32 %v817, %v968
        %v970 = vpop.f32.mrf.mxu0
        %v971 = vadd.f32 %v821, %v970
        %v972 = vpop.f32.mrf.mxu0
        %v973 = vadd.f32 %v817, %v972
        %v974 = vpop.f32.mrf.mxu0
        %v975 = vadd.f32 %v821, %v974
        %976 = vmatprep.mubr.bf16.mxu0 0
        %977 = vmatmul.mubr.bf16.gmra.mxu0 %v792
        %v978 = vpop.f32.mrf.mxu0
        %v979 = vadd.f32 %v817, %v978
        %v980 = vpop.f32.mrf.mxu0
        %v981 = vadd.f32 %v821, %v980
        %v982 = vpop.f32.mrf.mxu0
        %v983 = vadd.f32 %v817, %v982
        %v984 = vpop.f32.mrf.mxu0
        %v985 = vadd.f32 %v821, %v984
        %986 = vmatprep.mubr.bf16.mxu0 0
        %987 = vmatmul.mubr.bf16.gmra.mxu0 %v793
        %v988 = vpop.f32.mrf.mxu0
        %v989 = vadd.f32 %v817, %v988
        %v990 = vpop.f32.mrf.mxu0
        %v991 = vadd.f32 %v821, %v990
        %v992 = vpop.f32.mrf.mxu0
        %v993 = vadd.f32 %v817, %v992
        %v994 = vpop.f32.mrf.mxu0
        %v995 = vadd.f32 %v821, %v994
        %996 = vmatprep.mubr.bf16.mxu0 0
        %997 = vmatmul.mubr.bf16.gmra.mxu0 %v794
        %v998 = vpop.f32.mrf.mxu0
        %v999 = vadd.f32 %v817, %v998
        %v1000 = vpop.f32.mrf.mxu0
        %v1001 = vadd.f32 %v821, %v1000
        %v1002 = vpop.f32.mrf.mxu0
        %v1003 = vadd.f32 %v817, %v1002
        %v1004 = vpop.f32.mrf.mxu0
        %v1005 = vadd.f32 %v821, %v1004
        %1006 = vmatprep.mubr.bf16.mxu0 0
        %1007 = vmatmul.mubr.bf16.gmra.mxu0 %v795
        %v1008 = vpop.f32.mrf.mxu0
        %v1009 = vadd.f32 %v817, %v1008
        %v1010 = vpop.f32.mrf.mxu0
        %v1011 = vadd.f32 %v821, %v1010
        %v1012 = vpop.f32.mrf.mxu0
        %v1013 = vadd.f32 %v817, %v1012
        %v1014 = vpop.f32.mrf.mxu0
        %v1015 = vadd.f32 %v821, %v1014
        %1016 = vdwg.mxu0
        %v1017 = vtanh.pop %v939
        %v1018 = vtanh.pop %v943
        %v1019 = vtanh.pop %v949
        %v1020 = vtanh.pop %v953
        %v1021 = vtanh.pop %v959
        %v1022 = vtanh.pop %v963
        %v1023 = vtanh.pop %v969
        %v1024 = vtanh.pop %v973
        %v1025 = vtanh.pop %v979
        %v1026 = vtanh.pop %v983
        %v1027 = vtanh.pop %v989
        %v1028 = vtanh.pop %v993
        %v1029 = vtanh.pop %v999
        %v1030 = vtanh.pop %v1003
        %v1031 = vtanh.pop %v1009
        %v1032 = vtanh.pop %v1013
        %v1033 = vmul.f32 %v1017, 1.442695
        %v1034 = vpow.pop %v1033
        %v1035 = vmul.f32 %v1018, 1.442695
        %v1036 = vpow.pop %v1035
        %v1037 = vmul.f32 %v1019, 1.442695
        %v1038 = vpow.pop %v1037
        %v1039 = vmul.f32 %v1020, 1.442695
        %v1040 = vpow.pop %v1039
        %v1041 = vmul.f32 %v1021, 1.442695
        %v1042 = vpow.pop %v1041
        %v1043 = vmul.f32 %v1022, 1.442695
        %v1044 = vpow.pop %v1043
        %v1045 = vmul.f32 %v1023, 1.442695
        %v1046 = vpow.pop %v1045
        %v1047 = vmul.f32 %v1024, 1.442695
        %v1048 = vpow.pop %v1047
        %v1049 = vmul.f32 %v1025, 1.442695
        %v1050 = vpow.pop %v1049
        %v1051 = vmul.f32 %v1026, 1.442695
        %v1052 = vpow.pop %v1051
        %v1053 = vmul.f32 %v1027, 1.442695
        %v1054 = vpow.pop %v1053
        %v1055 = vmul.f32 %v1028, 1.442695
        %v1056 = vpow.pop %v1055
        %v1057 = vmul.f32 %v1029, 1.442695
        %v1058 = vpow.pop %v1057
        %v1059 = vmul.f32 %v1030, 1.442695
        %v1060 = vpow.pop %v1059
        %v1061 = vmul.f32 %v1031, 1.442695
        %v1062 = vpow.pop %v1061
        %v1063 = vmul.f32 %v1032, 1.442695
        %v1064 = vpow.pop %v1063
        %v1065 = vmul.f32 %v453, %v1034
        %v1066 = vmul.f32 %v455, %v1036
        %v1067 = vmul.f32 %v457, %v1038
        %v1068 = vmul.f32 %v459, %v1040
        %v1069 = vmul.f32 %v461, %v1042
        %v1070 = vmul.f32 %v463, %v1044
        %v1071 = vmul.f32 %v465, %v1046
        %v1072 = vmul.f32 %v467, %v1048
        %v1073 = vmul.f32 %v469, %v1050
        %v1074 = vmul.f32 %v471, %v1052
        %v1075 = vmul.f32 %v473, %v1054
        %v1076 = vmul.f32 %v475, %v1056
        %v1077 = vmul.f32 %v477, %v1058
        %v1078 = vmul.f32 %v479, %v1060
        %v1079 = vmul.f32 %v481, %v1062
        %v1080 = vmul.f32 %v483, %v1064
        %v1081 = vadd.f32 %v1065, %v941
        %v1082 = vadd.f32 %v1066, %v945
        %v1083 = vadd.f32 %v1067, %v951
        %v1084 = vadd.f32 %v1068, %v955
        %v1085 = vadd.f32 %v1069, %v961
        %v1086 = vadd.f32 %v1070, %v965
        %v1087 = vadd.f32 %v1071, %v971
        %v1088 = vadd.f32 %v1072, %v975
        %v1089 = vadd.f32 %v1073, %v981
        %v1090 = vadd.f32 %v1074, %v985
        %v1091 = vadd.f32 %v1075, %v991
        %v1092 = vadd.f32 %v1076, %v995
        %v1093 = vadd.f32 %v1077, %v1001
        %v1094 = vadd.f32 %v1078, %v1005
        %v1095 = vadd.f32 %v1079, %v1011
        %v1096 = vadd.f32 %v1080, %v1015
        %1097 = vadd.xlane.f32.xlu0 %v1017
        %v1098 = vpop.xlane.xlu0 %1097
        %1099 = vadd.xlane.f32.xlu0 %v1018
        %v1100 = vpop.xlane.xlu0 %1099
        %1101 = vadd.xlane.f32.xlu0 %v1019
        %v1102 = vpop.xlane.xlu0 %1101
        %1103 = vadd.xlane.f32.xlu0 %v1020
        %v1104 = vpop.xlane.xlu0 %1103
        %1105 = vadd.xlane.f32.xlu0 %v1021
        %v1106 = vpop.xlane.xlu0 %1105
        %1107 = vadd.xlane.f32.xlu0 %v1022
        %v1108 = vpop.xlane.xlu0 %1107
        %1109 = vadd.xlane.f32.xlu0 %v1023
        %v1110 = vpop.xlane.xlu0 %1109
        %1111 = vadd.xlane.f32.xlu0 %v1024
        %v1112 = vpop.xlane.xlu0 %1111
        %1113 = vadd.xlane.f32.xlu0 %v1025
        %v1114 = vpop.xlane.xlu0 %1113
        %1115 = vadd.xlane.f32.xlu0 %v1026
        %v1116 = vpop.xlane.xlu0 %1115
        %1117 = vadd.xlane.f32.xlu0 %v1027
        %v1118 = vpop.xlane.xlu0 %1117
        %1119 = vadd.xlane.f32.xlu0 %v1028
        %v1120 = vpop.xlane.xlu0 %1119
        %1121 = vadd.xlane.f32.xlu0 %v1029
        %v1122 = vpop.xlane.xlu0 %1121
        %1123 = vadd.xlane.f32.xlu0 %v1030
        %v1124 = vpop.xlane.xlu0 %1123
        %1125 = vadd.xlane.f32.xlu0 %v1031
        %v1126 = vpop.xlane.xlu0 %1125
        %1127 = vadd.xlane.f32.xlu0 %v1032
        %v1128 = vpop.xlane.xlu0 %1127
        %v1129 = vpack.c.bf16 %v1082, %v1081
        %v1130 = vpack.c.bf16 %v1084, %v1083
        %v1131 = vpack.c.bf16 %v1086, %v1085
        %v1132 = vpack.c.bf16 %v1088, %v1087
        %v1133 = vpack.c.bf16 %v1090, %v1089
        %v1134 = vpack.c.bf16 %v1092, %v1091
        %v1135 = vpack.c.bf16 %v1094, %v1093
        %v1136 = vpack.c.bf16 %v1096, %v1095
        %v1137 = vld [vmem:[#allocation8] sm:$0xf]
        %v1138 = vld [vmem:[#allocation8 + $0x4] sm:$0xf]
        %v1139 = vld [vmem:[#allocation8 + $0x8] sm:$0xf]
        %v1140 = vld [vmem:[#allocation8 + $0xc] sm:$0xf]
        %v1141 = vld [vmem:[#allocation8 + $0x10] sm:$0xf]
        %v1142 = vld [vmem:[#allocation8 + $0x14] sm:$0xf]
        %v1143 = vld [vmem:[#allocation8 + $0x18] sm:$0xf]
        %v1144 = vld [vmem:[#allocation8 + $0x1c] sm:$0xf]
        %v1145 = vld [vmem:[#allocation8 + $0x20] sm:$0xf]
        %v1146 = vld [vmem:[#allocation8 + $0x24] sm:$0xf]
        %v1147 = vld [vmem:[#allocation8 + $0x28] sm:$0xf]
        %v1148 = vld [vmem:[#allocation8 + $0x2c] sm:$0xf]
        %v1149 = vld [vmem:[#allocation8 + $0x30] sm:$0xf]
        %v1150 = vld [vmem:[#allocation8 + $0x34] sm:$0xf]
        %v1151 = vld [vmem:[#allocation8 + $0x38] sm:$0xf]
        %v1152 = vld [vmem:[#allocation8 + $0x3c] sm:$0xf]
        %v1153 = vld [vmem:[%s6] sm:$0x1]
        %v1155 = vlaneseq
        %v1156 = vshrl.u32 %v1155, 7
        %v1157 = vsub.s32 0, %v1156
        %v1158 = vrot.slane %v1153, %v1157
        %v1176 = vunpack.c.l.b16 %v1137
        %v1177 = vunpack.c.l.b16 %v1138
        %v1178 = vunpack.c.l.b16 %v1139
        %v1179 = vunpack.c.l.b16 %v1140
        %v1180 = vunpack.c.l.b16 %v1141
        %v1181 = vunpack.c.l.b16 %v1142
        %v1182 = vunpack.c.l.b16 %v1143
        %v1183 = vunpack.c.l.b16 %v1144
        %v1184 = vunpack.c.l.b16 %v1145
        %v1185 = vunpack.c.l.b16 %v1146
        %v1186 = vunpack.c.l.b16 %v1147
        %v1187 = vunpack.c.l.b16 %v1148
        %v1188 = vunpack.c.l.b16 %v1149
        %v1189 = vunpack.c.l.b16 %v1150
        %v1190 = vunpack.c.l.b16 %v1151
        %v1191 = vunpack.c.l.b16 %v1152
        %v1192 = vpack.c.b16 %v1177, %v1176
        %v1193 = vpack.c.b16 %v1179, %v1178
        %v1194 = vpack.c.b16 %v1181, %v1180
        %v1195 = vpack.c.b16 %v1183, %v1182
        %v1196 = vpack.c.b16 %v1185, %v1184
        %v1197 = vpack.c.b16 %v1187, %v1186
        %v1198 = vpack.c.b16 %v1189, %v1188
        %v1199 = vpack.c.b16 %v1191, %v1190
        %1208 = vmatprep.subr.bf16.mxu0 0
        %1209 = vmatpush1.bf16.msra.mxu0 %v1199
        %1210 = vmatprep.subr.bf16.mxu0 0
        %1211 = vmatpush1.bf16.msra.mxu0 %v1198
        %1212 = vmatprep.subr.bf16.mxu0 0
        %1213 = vmatpush1.bf16.msra.mxu0 %v1197
        %1214 = vmatprep.subr.bf16.mxu0 0
        %1215 = vmatpush1.bf16.msra.mxu0 %v1196
        %1216 = vmatprep.subr.bf16.mxu0 0
        %1217 = vmatpush1.bf16.msra.mxu0 %v1195
        %1218 = vmatprep.subr.bf16.mxu0 0
        %1219 = vmatpush1.bf16.msra.mxu0 %v1194
        %1220 = vmatprep.subr.bf16.mxu0 0
        %1221 = vmatpush1.bf16.msra.mxu0 %v1193
        %1222 = vmatprep.subr.bf16.mxu0 0
        %1223 = vmatpush1.bf16.msra.mxu0 %v1192
        %1224 = vmatprep.subr.bf16.mxu0 0
        %1225 = vmatpush2.bf16.msra.mxu0 0
        %1226 = vmatprep.subr.bf16.mxu0 0
        %1227 = vmatpush2.bf16.msra.mxu0 0
        %1228 = vmatprep.subr.bf16.mxu0 0
        %1229 = vmatpush2.bf16.msra.mxu0 0
        %1230 = vmatprep.subr.bf16.mxu0 0
        %1231 = vmatpush2.bf16.msra.mxu0 0
        %1232 = vmatprep.subr.bf16.mxu0 0
        %1233 = vmatpush2.bf16.msra.mxu0 0
        %1234 = vmatprep.subr.bf16.mxu0 0
        %1235 = vmatpush2.bf16.msra.mxu0 0
        %1236 = vmatprep.subr.bf16.mxu0 0
        %1237 = vmatpush2.bf16.msra.mxu0 0
        %1238 = vmatprep.subr.bf16.mxu0 0
        %1239 = vmatpush2.bf16.msra.mxu0 0
        %1240 = vmatprep.mubr.bf16.mxu0 0
        %1241 = vmatmul.mubr.bf16.gmra.mxu0 %v1129
        %v1242 = vpop.f32.mrf.mxu0
        %v1243 = vadd.f32 %v1158, %v1242
        %v1244 = vpop.f32.mrf.mxu0
        %v1245 = vpop.f32.mrf.mxu0
        %v1246 = vadd.f32 %v1158, %v1245
        %v1247 = vpop.f32.mrf.mxu0
        %1248 = vmatprep.mubr.bf16.mxu0 0
        %1249 = vmatmul.mubr.bf16.gmra.mxu0 %v1130
        %v1250 = vpop.f32.mrf.mxu0
        %v1251 = vadd.f32 %v1158, %v1250
        %v1252 = vpop.f32.mrf.mxu0
        %v1253 = vpop.f32.mrf.mxu0
        %v1254 = vadd.f32 %v1158, %v1253
        %v1255 = vpop.f32.mrf.mxu0
        %1256 = vmatprep.mubr.bf16.mxu0 0
        %1257 = vmatmul.mubr.bf16.gmra.mxu0 %v1131
        %v1258 = vpop.f32.mrf.mxu0
        %v1259 = vadd.f32 %v1158, %v1258
        %v1260 = vpop.f32.mrf.mxu0
        %v1261 = vpop.f32.mrf.mxu0
        %v1262 = vadd.f32 %v1158, %v1261
        %v1263 = vpop.f32.mrf.mxu0
        %1264 = vmatprep.mubr.bf16.mxu0 0
        %1265 = vmatmul.mubr.bf16.gmra.mxu0 %v1132
        %v1266 = vpop.f32.mrf.mxu0
        %v1267 = vadd.f32 %v1158, %v1266
        %v1268 = vpop.f32.mrf.mxu0
        %v1269 = vpop.f32.mrf.mxu0
        %v1270 = vadd.f32 %v1158, %v1269
        %v1271 = vpop.f32.mrf.mxu0
        %1272 = vmatprep.mubr.bf16.mxu0 0
        %1273 = vmatmul.mubr.bf16.gmra.mxu0 %v1133
        %v1274 = vpop.f32.mrf.mxu0
        %v1275 = vadd.f32 %v1158, %v1274
        %v1276 = vpop.f32.mrf.mxu0
        %v1277 = vpop.f32.mrf.mxu0
        %v1278 = vadd.f32 %v1158, %v1277
        %v1279 = vpop.f32.mrf.mxu0
        %1280 = vmatprep.mubr.bf16.mxu0 0
        %1281 = vmatmul.mubr.bf16.gmra.mxu0 %v1134
        %v1282 = vpop.f32.mrf.mxu0
        %v1283 = vadd.f32 %v1158, %v1282
        %v1284 = vpop.f32.mrf.mxu0
        %v1285 = vpop.f32.mrf.mxu0
        %v1286 = vadd.f32 %v1158, %v1285
        %v1287 = vpop.f32.mrf.mxu0
        %1288 = vmatprep.mubr.bf16.mxu0 0
        %1289 = vmatmul.mubr.bf16.gmra.mxu0 %v1135
        %v1290 = vpop.f32.mrf.mxu0
        %v1291 = vadd.f32 %v1158, %v1290
        %v1292 = vpop.f32.mrf.mxu0
        %v1293 = vpop.f32.mrf.mxu0
        %v1294 = vadd.f32 %v1158, %v1293
        %v1295 = vpop.f32.mrf.mxu0
        %1296 = vmatprep.mubr.bf16.mxu0 0
        %1297 = vmatmul.mubr.bf16.gmra.mxu0 %v1136
        %v1298 = vpop.f32.mrf.mxu0
        %v1299 = vadd.f32 %v1158, %v1298
        %v1300 = vpop.f32.mrf.mxu0
        %v1301 = vpop.f32.mrf.mxu0
        %v1302 = vadd.f32 %v1158, %v1301
        %v1303 = vpop.f32.mrf.mxu0
        %1304 = vdwg.mxu0
        %v1305 = vtanh.pop %v1243
        %v1306 = vtanh.pop %v1246
        %v1307 = vtanh.pop %v1251
        %v1308 = vtanh.pop %v1254
        %v1309 = vtanh.pop %v1259
        %v1310 = vtanh.pop %v1262
        %v1311 = vtanh.pop %v1267
        %v1312 = vtanh.pop %v1270
        %v1313 = vtanh.pop %v1275
        %v1314 = vtanh.pop %v1278
        %v1315 = vtanh.pop %v1283
        %v1316 = vtanh.pop %v1286
        %v1317 = vtanh.pop %v1291
        %v1318 = vtanh.pop %v1294
        %v1319 = vtanh.pop %v1299
        %v1320 = vtanh.pop %v1302
        %v1321 = vpack.c.bf16 %v1306, %v1305
        %v1322 = vpack.c.bf16 %v1308, %v1307
        %v1323 = vpack.c.bf16 %v1310, %v1309
        %v1324 = vpack.c.bf16 %v1312, %v1311
        %v1325 = vpack.c.bf16 %v1314, %v1313
        %v1326 = vpack.c.bf16 %v1316, %v1315
        %v1327 = vpack.c.bf16 %v1318, %v1317
        %v1328 = vpack.c.bf16 %v1320, %v1319
        %v1329 = vld [vmem:[#allocation10] sm:$0xff]
        %v1330 = vld [vmem:[#allocation10 + $0x8] sm:$0xff]
        %v1331 = vld [vmem:[#allocation10 + $0x10] sm:$0xff]
        %v1332 = vld [vmem:[#allocation10 + $0x18] sm:$0xff]
        %v1333 = vld [vmem:[#allocation10 + $0x20] sm:$0xff]
        %v1334 = vld [vmem:[#allocation10 + $0x28] sm:$0xff]
        %v1335 = vld [vmem:[#allocation10 + $0x30] sm:$0xff]
        %v1336 = vld [vmem:[#allocation10 + $0x38] sm:$0xff]
        %v1337 = vld [vmem:[#allocation10 + $0x40] sm:$0xff]
        %v1338 = vld [vmem:[#allocation10 + $0x48] sm:$0xff]
        %v1339 = vld [vmem:[#allocation10 + $0x50] sm:$0xff]
        %v1340 = vld [vmem:[#allocation10 + $0x58] sm:$0xff]
        %v1341 = vld [vmem:[#allocation10 + $0x60] sm:$0xff]
        %v1342 = vld [vmem:[#allocation10 + $0x68] sm:$0xff]
        %v1343 = vld [vmem:[#allocation10 + $0x70] sm:$0xff]
        %v1344 = vld [vmem:[#allocation10 + $0x78] sm:$0xff]
        %v1345 = vld [vmem:[%s8] sm:$0x3]
        %v1347 = vlaneseq
        %v1348 = vshrl.u32 %v1347, 7
        %v1349 = vsub.s32 0, %v1348
        %v1350 = vrot.slane %v1345, %v1349
        %v1351 = vlaneseq
        %v1352 = vshrl.u32 %v1351, 7
        %v1353 = vsub.s32 1, %v1352
        %v1354 = vrot.slane %v1345, %v1353
        %v1373 = vunpack.c.l.b16 %v1329
        %v1374 = vunpack.c.h.b16 %v1329
        %v1375 = vunpack.c.l.b16 %v1330
        %v1376 = vunpack.c.h.b16 %v1330
        %v1377 = vunpack.c.l.b16 %v1331
        %v1378 = vunpack.c.h.b16 %v1331
        %v1379 = vunpack.c.l.b16 %v1332
        %v1380 = vunpack.c.h.b16 %v1332
        %v1381 = vunpack.c.l.b16 %v1333
        %v1382 = vunpack.c.h.b16 %v1333
        %v1383 = vunpack.c.l.b16 %v1334
        %v1384 = vunpack.c.h.b16 %v1334
        %v1385 = vunpack.c.l.b16 %v1335
        %v1386 = vunpack.c.h.b16 %v1335
        %v1387 = vunpack.c.l.b16 %v1336
        %v1388 = vunpack.c.h.b16 %v1336
        %v1389 = vunpack.c.l.b16 %v1337
        %v1390 = vunpack.c.h.b16 %v1337
        %v1391 = vunpack.c.l.b16 %v1338
        %v1392 = vunpack.c.h.b16 %v1338
        %v1393 = vunpack.c.l.b16 %v1339
        %v1394 = vunpack.c.h.b16 %v1339
        %v1395 = vunpack.c.l.b16 %v1340
        %v1396 = vunpack.c.h.b16 %v1340
        %v1397 = vunpack.c.l.b16 %v1341
        %v1398 = vunpack.c.h.b16 %v1341
        %v1399 = vunpack.c.l.b16 %v1342
        %v1400 = vunpack.c.h.b16 %v1342
        %v1401 = vunpack.c.l.b16 %v1343
        %v1402 = vunpack.c.h.b16 %v1343
        %v1403 = vunpack.c.l.b16 %v1344
        %v1404 = vunpack.c.h.b16 %v1344
        %v1405 = vpack.c.b16 %v1375, %v1373
        %v1406 = vpack.c.b16 %v1376, %v1374
        %v1407 = vpack.c.b16 %v1379, %v1377
        %v1408 = vpack.c.b16 %v1380, %v1378
        %v1409 = vpack.c.b16 %v1383, %v1381
        %v1410 = vpack.c.b16 %v1384, %v1382
        %v1411 = vpack.c.b16 %v1387, %v1385
        %v1412 = vpack.c.b16 %v1388, %v1386
        %v1413 = vpack.c.b16 %v1391, %v1389
        %v1414 = vpack.c.b16 %v1392, %v1390
        %v1415 = vpack.c.b16 %v1395, %v1393
        %v1416 = vpack.c.b16 %v1396, %v1394
        %v1417 = vpack.c.b16 %v1399, %v1397
        %v1418 = vpack.c.b16 %v1400, %v1398
        %v1419 = vpack.c.b16 %v1403, %v1401
        %v1420 = vpack.c.b16 %v1404, %v1402
        %1437 = vmatprep.subr.bf16.mxu0 %v1420
        %1438 = vmatpush1.bf16.msra.mxu0 %v1419
        %1439 = vmatprep.subr.bf16.mxu0 %v1418
        %1440 = vmatpush1.bf16.msra.mxu0 %v1417
        %1441 = vmatprep.subr.bf16.mxu0 %v1416
        %1442 = vmatpush1.bf16.msra.mxu0 %v1415
        %1443 = vmatprep.subr.bf16.mxu0 %v1414
        %1444 = vmatpush1.bf16.msra.mxu0 %v1413
        %1445 = vmatprep.subr.bf16.mxu0 %v1412
        %1446 = vmatpush1.bf16.msra.mxu0 %v1411
        %1447 = vmatprep.subr.bf16.mxu0 %v1410
        %1448 = vmatpush1.bf16.msra.mxu0 %v1409
        %1449 = vmatprep.subr.bf16.mxu0 %v1408
        %1450 = vmatpush1.bf16.msra.mxu0 %v1407
        %1451 = vmatprep.subr.bf16.mxu0 %v1406
        %1452 = vmatpush1.bf16.msra.mxu0 %v1405
        %1453 = vmatprep.subr.bf16.mxu0 0
        %1454 = vmatpush2.bf16.msra.mxu0 0
        %1455 = vmatprep.subr.bf16.mxu0 0
        %1456 = vmatpush2.bf16.msra.mxu0 0
        %1457 = vmatprep.subr.bf16.mxu0 0
        %1458 = vmatpush2.bf16.msra.mxu0 0
        %1459 = vmatprep.subr.bf16.mxu0 0
        %1460 = vmatpush2.bf16.msra.mxu0 0
        %1461 = vmatprep.subr.bf16.mxu0 0
        %1462 = vmatpush2.bf16.msra.mxu0 0
        %1463 = vmatprep.subr.bf16.mxu0 0
        %1464 = vmatpush2.bf16.msra.mxu0 0
        %1465 = vmatprep.subr.bf16.mxu0 0
        %1466 = vmatpush2.bf16.msra.mxu0 0
        %1467 = vmatprep.subr.bf16.mxu0 0
        %1468 = vmatpush2.bf16.msra.mxu0 0
        %1469 = vmatprep.mubr.bf16.mxu0 0
        %1470 = vmatmul.mubr.bf16.gmra.mxu0 %v1321
        %v1471 = vpop.f32.mrf.mxu0
        %v1472 = vadd.f32 %v1350, %v1471
        %v1473 = vpop.f32.mrf.mxu0
        %v1474 = vadd.f32 %v1354, %v1473
        %v1475 = vpop.f32.mrf.mxu0
        %v1476 = vadd.f32 %v1350, %v1475
        %v1477 = vpop.f32.mrf.mxu0
        %v1478 = vadd.f32 %v1354, %v1477
        %1479 = vmatprep.mubr.bf16.mxu0 0
        %1480 = vmatmul.mubr.bf16.gmra.mxu0 %v1322
        %v1481 = vpop.f32.mrf.mxu0
        %v1482 = vadd.f32 %v1350, %v1481
        %v1483 = vpop.f32.mrf.mxu0
        %v1484 = vadd.f32 %v1354, %v1483
        %v1485 = vpop.f32.mrf.mxu0
        %v1486 = vadd.f32 %v1350, %v1485
        %v1487 = vpop.f32.mrf.mxu0
        %v1488 = vadd.f32 %v1354, %v1487
        %1489 = vmatprep.mubr.bf16.mxu0 0
        %1490 = vmatmul.mubr.bf16.gmra.mxu0 %v1323
        %v1491 = vpop.f32.mrf.mxu0
        %v1492 = vadd.f32 %v1350, %v1491
        %v1493 = vpop.f32.mrf.mxu0
        %v1494 = vadd.f32 %v1354, %v1493
        %v1495 = vpop.f32.mrf.mxu0
        %v1496 = vadd.f32 %v1350, %v1495
        %v1497 = vpop.f32.mrf.mxu0
        %v1498 = vadd.f32 %v1354, %v1497
        %1499 = vmatprep.mubr.bf16.mxu0 0
        %1500 = vmatmul.mubr.bf16.gmra.mxu0 %v1324
        %v1501 = vpop.f32.mrf.mxu0
        %v1502 = vadd.f32 %v1350, %v1501
        %v1503 = vpop.f32.mrf.mxu0
        %v1504 = vadd.f32 %v1354, %v1503
        %v1505 = vpop.f32.mrf.mxu0
        %v1506 = vadd.f32 %v1350, %v1505
        %v1507 = vpop.f32.mrf.mxu0
        %v1508 = vadd.f32 %v1354, %v1507
        %1509 = vmatprep.mubr.bf16.mxu0 0
        %1510 = vmatmul.mubr.bf16.gmra.mxu0 %v1325
        %v1511 = vpop.f32.mrf.mxu0
        %v1512 = vadd.f32 %v1350, %v1511
        %v1513 = vpop.f32.mrf.mxu0
        %v1514 = vadd.f32 %v1354, %v1513
        %v1515 = vpop.f32.mrf.mxu0
        %v1516 = vadd.f32 %v1350, %v1515
        %v1517 = vpop.f32.mrf.mxu0
        %v1518 = vadd.f32 %v1354, %v1517
        %1519 = vmatprep.mubr.bf16.mxu0 0
        %1520 = vmatmul.mubr.bf16.gmra.mxu0 %v1326
        %v1521 = vpop.f32.mrf.mxu0
        %v1522 = vadd.f32 %v1350, %v1521
        %v1523 = vpop.f32.mrf.mxu0
        %v1524 = vadd.f32 %v1354, %v1523
        %v1525 = vpop.f32.mrf.mxu0
        %v1526 = vadd.f32 %v1350, %v1525
        %v1527 = vpop.f32.mrf.mxu0
        %v1528 = vadd.f32 %v1354, %v1527
        %1529 = vmatprep.mubr.bf16.mxu0 0
        %1530 = vmatmul.mubr.bf16.gmra.mxu0 %v1327
        %v1531 = vpop.f32.mrf.mxu0
        %v1532 = vadd.f32 %v1350, %v1531
        %v1533 = vpop.f32.mrf.mxu0
        %v1534 = vadd.f32 %v1354, %v1533
        %v1535 = vpop.f32.mrf.mxu0
        %v1536 = vadd.f32 %v1350, %v1535
        %v1537 = vpop.f32.mrf.mxu0
        %v1538 = vadd.f32 %v1354, %v1537
        %1539 = vmatprep.mubr.bf16.mxu0 0
        %1540 = vmatmul.mubr.bf16.gmra.mxu0 %v1328
        %v1541 = vpop.f32.mrf.mxu0
        %v1542 = vadd.f32 %v1350, %v1541
        %v1543 = vpop.f32.mrf.mxu0
        %v1544 = vadd.f32 %v1354, %v1543
        %v1545 = vpop.f32.mrf.mxu0
        %v1546 = vadd.f32 %v1350, %v1545
        %v1547 = vpop.f32.mrf.mxu0
        %v1548 = vadd.f32 %v1354, %v1547
        %1549 = vdwg.mxu0
        %v1550 = vtanh.pop %v1472
        %v1551 = vtanh.pop %v1476
        %v1552 = vtanh.pop %v1482
        %v1553 = vtanh.pop %v1486
        %v1554 = vtanh.pop %v1492
        %v1555 = vtanh.pop %v1496
        %v1556 = vtanh.pop %v1502
        %v1557 = vtanh.pop %v1506
        %v1558 = vtanh.pop %v1512
        %v1559 = vtanh.pop %v1516
        %v1560 = vtanh.pop %v1522
        %v1561 = vtanh.pop %v1526
        %v1562 = vtanh.pop %v1532
        %v1563 = vtanh.pop %v1536
        %v1564 = vtanh.pop %v1542
        %v1565 = vtanh.pop %v1546
        %v1566 = vmul.f32 %v1550, 1.442695
        %v1567 = vpow.pop %v1566
        %v1568 = vmul.f32 %v1551, 1.442695
        %v1569 = vpow.pop %v1568
        %v1570 = vmul.f32 %v1552, 1.442695
        %v1571 = vpow.pop %v1570
        %v1572 = vmul.f32 %v1553, 1.442695
        %v1573 = vpow.pop %v1572
        %v1574 = vmul.f32 %v1554, 1.442695
        %v1575 = vpow.pop %v1574
        %v1576 = vmul.f32 %v1555, 1.442695
        %v1577 = vpow.pop %v1576
        %v1578 = vmul.f32 %v1556, 1.442695
        %v1579 = vpow.pop %v1578
        %v1580 = vmul.f32 %v1557, 1.442695
        %v1581 = vpow.pop %v1580
        %v1582 = vmul.f32 %v1558, 1.442695
        %v1583 = vpow.pop %v1582
        %v1584 = vmul.f32 %v1559, 1.442695
        %v1585 = vpow.pop %v1584
        %v1586 = vmul.f32 %v1560, 1.442695
        %v1587 = vpow.pop %v1586
        %v1588 = vmul.f32 %v1561, 1.442695
        %v1589 = vpow.pop %v1588
        %v1590 = vmul.f32 %v1562, 1.442695
        %v1591 = vpow.pop %v1590
        %v1592 = vmul.f32 %v1563, 1.442695
        %v1593 = vpow.pop %v1592
        %v1594 = vmul.f32 %v1564, 1.442695
        %v1595 = vpow.pop %v1594
        %v1596 = vmul.f32 %v1565, 1.442695
        %v1597 = vpow.pop %v1596
        %v1598 = vmul.f32 %v452, %v1567
        %v1599 = vmul.f32 %v454, %v1569
        %v1600 = vmul.f32 %v456, %v1571
        %v1601 = vmul.f32 %v458, %v1573
        %v1602 = vmul.f32 %v460, %v1575
        %v1603 = vmul.f32 %v462, %v1577
        %v1604 = vmul.f32 %v464, %v1579
        %v1605 = vmul.f32 %v466, %v1581
        %v1606 = vmul.f32 %v468, %v1583
        %v1607 = vmul.f32 %v470, %v1585
        %v1608 = vmul.f32 %v472, %v1587
        %v1609 = vmul.f32 %v474, %v1589
        %v1610 = vmul.f32 %v476, %v1591
        %v1611 = vmul.f32 %v478, %v1593
        %v1612 = vmul.f32 %v480, %v1595
        %v1613 = vmul.f32 %v482, %v1597
        %v1614 = vadd.f32 %v1598, %v1474
        %v1615 = vadd.f32 %v1599, %v1478
        %v1616 = vadd.f32 %v1600, %v1484
        %v1617 = vadd.f32 %v1601, %v1488
        %v1618 = vadd.f32 %v1602, %v1494
        %v1619 = vadd.f32 %v1603, %v1498
        %v1620 = vadd.f32 %v1604, %v1504
        %v1621 = vadd.f32 %v1605, %v1508
        %v1622 = vadd.f32 %v1606, %v1514
        %v1623 = vadd.f32 %v1607, %v1518
        %v1624 = vadd.f32 %v1608, %v1524
        %v1625 = vadd.f32 %v1609, %v1528
        %v1626 = vadd.f32 %v1610, %v1534
        %v1627 = vadd.f32 %v1611, %v1538
        %v1628 = vadd.f32 %v1612, %v1544
        %v1629 = vadd.f32 %v1613, %v1548
        %1630 = vadd.xlane.f32.xlu0 %v1550
        %v1631 = vpop.xlane.xlu0 %1630
        %1632 = vadd.xlane.f32.xlu0 %v1551
        %v1633 = vpop.xlane.xlu0 %1632
        %1634 = vadd.xlane.f32.xlu0 %v1552
        %v1635 = vpop.xlane.xlu0 %1634
        %1636 = vadd.xlane.f32.xlu0 %v1553
        %v1637 = vpop.xlane.xlu0 %1636
        %1638 = vadd.xlane.f32.xlu0 %v1554
        %v1639 = vpop.xlane.xlu0 %1638
        %1640 = vadd.xlane.f32.xlu0 %v1555
        %v1641 = vpop.xlane.xlu0 %1640
        %1642 = vadd.xlane.f32.xlu0 %v1556
        %v1643 = vpop.xlane.xlu0 %1642
        %1644 = vadd.xlane.f32.xlu0 %v1557
        %v1645 = vpop.xlane.xlu0 %1644
        %1646 = vadd.xlane.f32.xlu0 %v1558
        %v1647 = vpop.xlane.xlu0 %1646
        %1648 = vadd.xlane.f32.xlu0 %v1559
        %v1649 = vpop.xlane.xlu0 %1648
        %1650 = vadd.xlane.f32.xlu0 %v1560
        %v1651 = vpop.xlane.xlu0 %1650
        %1652 = vadd.xlane.f32.xlu0 %v1561
        %v1653 = vpop.xlane.xlu0 %1652
        %1654 = vadd.xlane.f32.xlu0 %v1562
        %v1655 = vpop.xlane.xlu0 %1654
        %1656 = vadd.xlane.f32.xlu0 %v1563
        %v1657 = vpop.xlane.xlu0 %1656
        %1658 = vadd.xlane.f32.xlu0 %v1564
        %v1659 = vpop.xlane.xlu0 %1658
        %1660 = vadd.xlane.f32.xlu0 %v1565
        %v1661 = vpop.xlane.xlu0 %1660
        %v1662 = vadd.f32 %v1098, %v1631
        %v1663 = vadd.f32 %v1100, %v1633
        %v1664 = vadd.f32 %v1102, %v1635
        %v1665 = vadd.f32 %v1104, %v1637
        %v1666 = vadd.f32 %v1106, %v1639
        %v1667 = vadd.f32 %v1108, %v1641
        %v1668 = vadd.f32 %v1110, %v1643
        %v1669 = vadd.f32 %v1112, %v1645
        %v1670 = vadd.f32 %v1114, %v1647
        %v1671 = vadd.f32 %v1116, %v1649
        %v1672 = vadd.f32 %v1118, %v1651
        %v1673 = vadd.f32 %v1120, %v1653
        %v1674 = vadd.f32 %v1122, %v1655
        %v1675 = vadd.f32 %v1124, %v1657
        %v1676 = vadd.f32 %v1126, %v1659
        %v1677 = vadd.f32 %v1128, %v1661
        %1678 = vst [vmem:[%s440] sm:$0xff] %v1614
        %1679 = vst [vmem:[%s440 + $0x10] sm:$0xff] %v1615
        %1680 = vst [vmem:[%s440 + $0x20] sm:$0xff] %v1616
        %1681 = vst [vmem:[%s440 + $0x30] sm:$0xff] %v1617
        %1682 = vst [vmem:[%s440 + $0x40] sm:$0xff] %v1618
        %1683 = vst [vmem:[%s440 + $0x50] sm:$0xff] %v1619
        %1684 = vst [vmem:[%s440 + $0x60] sm:$0xff] %v1620
        %1685 = vst [vmem:[%s440 + $0x70] sm:$0xff] %v1621
        %1686 = vst [vmem:[%s440 + $0x80] sm:$0xff] %v1622
        %1687 = vst [vmem:[%s440 + $0x90] sm:$0xff] %v1623
        %1688 = vst [vmem:[%s440 + $0xa0] sm:$0xff] %v1624
        %1689 = vst [vmem:[%s440 + $0xb0] sm:$0xff] %v1625
        %1690 = vst [vmem:[%s440 + $0xc0] sm:$0xff] %v1626
        %1691 = vst [vmem:[%s440 + $0xd0] sm:$0xff] %v1627
        %1692 = vst [vmem:[%s440 + $0xe0] sm:$0xff] %v1628
        %1693 = vst [vmem:[%s440 + $0xf0] sm:$0xff] %v1629
        %1694 = vst [vmem:[%s440 + $0x8] sm:$0xff] %v1081
        %1695 = vst [vmem:[%s440 + $0x18] sm:$0xff] %v1082
        %1696 = vst [vmem:[%s440 + $0x28] sm:$0xff] %v1083
        %1697 = vst [vmem:[%s440 + $0x38] sm:$0xff] %v1084
        %1698 = vst [vmem:[%s440 + $0x48] sm:$0xff] %v1085
        %1699 = vst [vmem:[%s440 + $0x58] sm:$0xff] %v1086
        %1700 = vst [vmem:[%s440 + $0x68] sm:$0xff] %v1087
        %1701 = vst [vmem:[%s440 + $0x78] sm:$0xff] %v1088
        %1702 = vst [vmem:[%s440 + $0x88] sm:$0xff] %v1089
        %1703 = vst [vmem:[%s440 + $0x98] sm:$0xff] %v1090
        %1704 = vst [vmem:[%s440 + $0xa8] sm:$0xff] %v1091
        %1705 = vst [vmem:[%s440 + $0xb8] sm:$0xff] %v1092
        %1706 = vst [vmem:[%s440 + $0xc8] sm:$0xff] %v1093
        %1707 = vst [vmem:[%s440 + $0xd8] sm:$0xff] %v1094
        %1708 = vst [vmem:[%s440 + $0xe8] sm:$0xff] %v1095
        %1709 = vst [vmem:[%s440 + $0xf8] sm:$0xff] %v1096
        %v1710 = vld [vmem:[%s440] sm:$0xff]
        %v1711 = vld [vmem:[%s440 + $0x8] sm:$0xff]
        %v1712 = vld [vmem:[%s440 + $0x10] sm:$0xff]
        %v1713 = vld [vmem:[%s440 + $0x18] sm:$0xff]
        %v1714 = vld [vmem:[%s440 + $0x20] sm:$0xff]
        %v1715 = vld [vmem:[%s440 + $0x28] sm:$0xff]
        %v1716 = vld [vmem:[%s440 + $0x30] sm:$0xff]
        %v1717 = vld [vmem:[%s440 + $0x38] sm:$0xff]
        %v1718 = vld [vmem:[%s440 + $0x40] sm:$0xff]
        %v1719 = vld [vmem:[%s440 + $0x48] sm:$0xff]
        %v1720 = vld [vmem:[%s440 + $0x50] sm:$0xff]
        %v1721 = vld [vmem:[%s440 + $0x58] sm:$0xff]
        %v1722 = vld [vmem:[%s440 + $0x60] sm:$0xff]
        %v1723 = vld [vmem:[%s440 + $0x68] sm:$0xff]
        %v1724 = vld [vmem:[%s440 + $0x70] sm:$0xff]
        %v1725 = vld [vmem:[%s440 + $0x78] sm:$0xff]
        %v1726 = vld [vmem:[%s440 + $0x80] sm:$0xff]
        %v1727 = vld [vmem:[%s440 + $0x88] sm:$0xff]
        %v1728 = vld [vmem:[%s440 + $0x90] sm:$0xff]
        %v1729 = vld [vmem:[%s440 + $0x98] sm:$0xff]
        %v1730 = vld [vmem:[%s440 + $0xa0] sm:$0xff]
        %v1731 = vld [vmem:[%s440 + $0xa8] sm:$0xff]
        %v1732 = vld [vmem:[%s440 + $0xb0] sm:$0xff]
        %v1733 = vld [vmem:[%s440 + $0xb8] sm:$0xff]
        %v1734 = vld [vmem:[%s440 + $0xc0] sm:$0xff]
        %v1735 = vld [vmem:[%s440 + $0xc8] sm:$0xff]
        %v1736 = vld [vmem:[%s440 + $0xd0] sm:$0xff]
        %v1737 = vld [vmem:[%s440 + $0xd8] sm:$0xff]
        %v1738 = vld [vmem:[%s440 + $0xe0] sm:$0xff]
        %v1739 = vld [vmem:[%s440 + $0xe8] sm:$0xff]
        %v1740 = vld [vmem:[%s440 + $0xf0] sm:$0xff]
        %v1741 = vld [vmem:[%s440 + $0xf8] sm:$0xff]
        %1758 = vrot.lane.b32.xlu0 %v1711, 1
        %v1759 = vpop.permute.xlu0 %1758
        %1760 = vrot.lane.b32.xlu0 %v1713, 1
        %v1761 = vpop.permute.xlu0 %1760
        %1762 = vrot.lane.b32.xlu0 %v1715, 1
        %v1763 = vpop.permute.xlu0 %1762
        %1764 = vrot.lane.b32.xlu0 %v1717, 1
        %v1765 = vpop.permute.xlu0 %1764
        %1766 = vrot.lane.b32.xlu0 %v1719, 1
        %v1767 = vpop.permute.xlu0 %1766
        %1768 = vrot.lane.b32.xlu0 %v1721, 1
        %v1769 = vpop.permute.xlu0 %1768
        %1770 = vrot.lane.b32.xlu0 %v1723, 1
        %v1771 = vpop.permute.xlu0 %1770
        %1772 = vrot.lane.b32.xlu0 %v1725, 1
        %v1773 = vpop.permute.xlu0 %1772
        %1774 = vrot.lane.b32.xlu0 %v1727, 1
        %v1775 = vpop.permute.xlu0 %1774
        %1776 = vrot.lane.b32.xlu0 %v1729, 1
        %v1777 = vpop.permute.xlu0 %1776
        %1778 = vrot.lane.b32.xlu0 %v1731, 1
        %v1779 = vpop.permute.xlu0 %1778
        %1780 = vrot.lane.b32.xlu0 %v1733, 1
        %v1781 = vpop.permute.xlu0 %1780
        %1782 = vrot.lane.b32.xlu0 %v1735, 1
        %v1783 = vpop.permute.xlu0 %1782
        %1784 = vrot.lane.b32.xlu0 %v1737, 1
        %v1785 = vpop.permute.xlu0 %1784
        %1786 = vrot.lane.b32.xlu0 %v1739, 1
        %v1787 = vpop.permute.xlu0 %1786
        %1788 = vrot.lane.b32.xlu0 %v1741, 1
        %v1789 = vpop.permute.xlu0 %1788
        %1822 = vrot.lane.b32.xlu0 %v1710, 1
        %v1823 = vpop.permute.xlu0 %1822
        %1824 = vrot.lane.b32.xlu0 %v1712, 1
        %v1825 = vpop.permute.xlu0 %1824
        %1826 = vrot.lane.b32.xlu0 %v1714, 1
        %v1827 = vpop.permute.xlu0 %1826
        %1828 = vrot.lane.b32.xlu0 %v1716, 1
        %v1829 = vpop.permute.xlu0 %1828
        %1830 = vrot.lane.b32.xlu0 %v1718, 1
        %v1831 = vpop.permute.xlu0 %1830
        %1832 = vrot.lane.b32.xlu0 %v1720, 1
        %v1833 = vpop.permute.xlu0 %1832
        %1834 = vrot.lane.b32.xlu0 %v1722, 1
        %v1835 = vpop.permute.xlu0 %1834
        %1836 = vrot.lane.b32.xlu0 %v1724, 1
        %v1837 = vpop.permute.xlu0 %1836
        %1838 = vrot.lane.b32.xlu0 %v1726, 1
        %v1839 = vpop.permute.xlu0 %1838
        %1840 = vrot.lane.b32.xlu0 %v1728, 1
        %v1841 = vpop.permute.xlu0 %1840
        %1842 = vrot.lane.b32.xlu0 %v1730, 1
        %v1843 = vpop.permute.xlu0 %1842
        %1844 = vrot.lane.b32.xlu0 %v1732, 1
        %v1845 = vpop.permute.xlu0 %1844
        %1846 = vrot.lane.b32.xlu0 %v1734, 1
        %v1847 = vpop.permute.xlu0 %1846
        %1848 = vrot.lane.b32.xlu0 %v1736, 1
        %v1849 = vpop.permute.xlu0 %1848
        %1850 = vrot.lane.b32.xlu0 %v1738, 1
        %v1851 = vpop.permute.xlu0 %1850
        %1852 = vrot.lane.b32.xlu0 %v1740, 1
        %v1853 = vpop.permute.xlu0 %1852
        %vm1854 = vcmask 7168
        %v1855 = vsel %vm1854, %v1823, %v1759
        %v1856 = vsel %vm1854, %v1825, %v1761
        %v1857 = vsel %vm1854, %v1827, %v1763
        %v1858 = vsel %vm1854, %v1829, %v1765
        %v1859 = vsel %vm1854, %v1831, %v1767
        %v1860 = vsel %vm1854, %v1833, %v1769
        %v1861 = vsel %vm1854, %v1835, %v1771
        %v1862 = vsel %vm1854, %v1837, %v1773
        %v1863 = vsel %vm1854, %v1839, %v1775
        %v1864 = vsel %vm1854, %v1841, %v1777
        %v1865 = vsel %vm1854, %v1843, %v1779
        %v1866 = vsel %vm1854, %v1845, %v1781
        %v1867 = vsel %vm1854, %v1847, %v1783
        %v1868 = vsel %vm1854, %v1849, %v1785
        %v1869 = vsel %vm1854, %v1851, %v1787
        %v1870 = vsel %vm1854, %v1853, %v1789
        %v1903 = vsel %vm1854, %v1759, %v1823
        %v1904 = vsel %vm1854, %v1761, %v1825
        %v1905 = vsel %vm1854, %v1763, %v1827
        %v1906 = vsel %vm1854, %v1765, %v1829
        %v1907 = vsel %vm1854, %v1767, %v1831
        %v1908 = vsel %vm1854, %v1769, %v1833
        %v1909 = vsel %vm1854, %v1771, %v1835
        %v1910 = vsel %vm1854, %v1773, %v1837
        %v1911 = vsel %vm1854, %v1775, %v1839
        %v1912 = vsel %vm1854, %v1777, %v1841
        %v1913 = vsel %vm1854, %v1779, %v1843
        %v1914 = vsel %vm1854, %v1781, %v1845
        %v1915 = vsel %vm1854, %v1783, %v1847
        %v1916 = vsel %vm1854, %v1785, %v1849
        %v1917 = vsel %vm1854, %v1787, %v1851
        %v1918 = vsel %vm1854, %v1789, %v1853
        %v1919 = vsub.f32 %v1903, %v1710
        %v1920 = vsub.f32 %v1855, %v1711
        %v1921 = vsub.f32 %v1904, %v1712
        %v1922 = vsub.f32 %v1856, %v1713
        %v1923 = vsub.f32 %v1905, %v1714
        %v1924 = vsub.f32 %v1857, %v1715
        %v1925 = vsub.f32 %v1906, %v1716
        %v1926 = vsub.f32 %v1858, %v1717
        %v1927 = vsub.f32 %v1907, %v1718
        %v1928 = vsub.f32 %v1859, %v1719
        %v1929 = vsub.f32 %v1908, %v1720
        %v1930 = vsub.f32 %v1860, %v1721
        %v1931 = vsub.f32 %v1909, %v1722
        %v1932 = vsub.f32 %v1861, %v1723
        %v1933 = vsub.f32 %v1910, %v1724
        %v1934 = vsub.f32 %v1862, %v1725
        %v1935 = vsub.f32 %v1911, %v1726
        %v1936 = vsub.f32 %v1863, %v1727
        %v1937 = vsub.f32 %v1912, %v1728
        %v1938 = vsub.f32 %v1864, %v1729
        %v1939 = vsub.f32 %v1913, %v1730
        %v1940 = vsub.f32 %v1865, %v1731
        %v1941 = vsub.f32 %v1914, %v1732
        %v1942 = vsub.f32 %v1866, %v1733
        %v1943 = vsub.f32 %v1915, %v1734
        %v1944 = vsub.f32 %v1867, %v1735
        %v1945 = vsub.f32 %v1916, %v1736
        %v1946 = vsub.f32 %v1868, %v1737
        %v1947 = vsub.f32 %v1917, %v1738
        %v1948 = vsub.f32 %v1869, %v1739
        %v1949 = vsub.f32 %v1918, %v1740
        %v1950 = vsub.f32 %v1870, %v1741
        %v1951 = vmul.f32 %v1710, %v1710
        %v1952 = vmul.f32 %v1711, %v1711
        %v1953 = vmul.f32 %v1712, %v1712
        %v1954 = vmul.f32 %v1713, %v1713
        %v1955 = vmul.f32 %v1714, %v1714
        %v1956 = vmul.f32 %v1715, %v1715
        %v1957 = vmul.f32 %v1716, %v1716
        %v1958 = vmul.f32 %v1717, %v1717
        %v1959 = vmul.f32 %v1718, %v1718
        %v1960 = vmul.f32 %v1719, %v1719
        %v1961 = vmul.f32 %v1720, %v1720
        %v1962 = vmul.f32 %v1721, %v1721
        %v1963 = vmul.f32 %v1722, %v1722
        %v1964 = vmul.f32 %v1723, %v1723
        %v1965 = vmul.f32 %v1724, %v1724
        %v1966 = vmul.f32 %v1725, %v1725
        %v1967 = vmul.f32 %v1726, %v1726
        %v1968 = vmul.f32 %v1727, %v1727
        %v1969 = vmul.f32 %v1728, %v1728
        %v1970 = vmul.f32 %v1729, %v1729
        %v1971 = vmul.f32 %v1730, %v1730
        %v1972 = vmul.f32 %v1731, %v1731
        %v1973 = vmul.f32 %v1732, %v1732
        %v1974 = vmul.f32 %v1733, %v1733
        %v1975 = vmul.f32 %v1734, %v1734
        %v1976 = vmul.f32 %v1735, %v1735
        %v1977 = vmul.f32 %v1736, %v1736
        %v1978 = vmul.f32 %v1737, %v1737
        %v1979 = vmul.f32 %v1738, %v1738
        %v1980 = vmul.f32 %v1739, %v1739
        %v1981 = vmul.f32 %v1740, %v1740
        %v1982 = vmul.f32 %v1741, %v1741
        %v1983 = vmul.f32 %v1919, 0.5
        %v1984 = vmul.f32 %v1920, 0.5
        %v1985 = vmul.f32 %v1921, 0.5
        %v1986 = vmul.f32 %v1922, 0.5
        %v1987 = vmul.f32 %v1923, 0.5
        %v1988 = vmul.f32 %v1924, 0.5
        %v1989 = vmul.f32 %v1925, 0.5
        %v1990 = vmul.f32 %v1926, 0.5
        %v1991 = vmul.f32 %v1927, 0.5
        %v1992 = vmul.f32 %v1928, 0.5
        %v1993 = vmul.f32 %v1929, 0.5
        %v1994 = vmul.f32 %v1930, 0.5
        %v1995 = vmul.f32 %v1931, 0.5
        %v1996 = vmul.f32 %v1932, 0.5
        %v1997 = vmul.f32 %v1933, 0.5
        %v1998 = vmul.f32 %v1934, 0.5
        %v1999 = vmul.f32 %v1935, 0.5
        %v2000 = vmul.f32 %v1936, 0.5
        %v2001 = vmul.f32 %v1937, 0.5
        %v2002 = vmul.f32 %v1938, 0.5
        %v2003 = vmul.f32 %v1939, 0.5
        %v2004 = vmul.f32 %v1940, 0.5
        %v2005 = vmul.f32 %v1941, 0.5
        %v2006 = vmul.f32 %v1942, 0.5
        %v2007 = vmul.f32 %v1943, 0.5
        %v2008 = vmul.f32 %v1944, 0.5
        %v2009 = vmul.f32 %v1945, 0.5
        %v2010 = vmul.f32 %v1946, 0.5
        %v2011 = vmul.f32 %v1947, 0.5
        %v2012 = vmul.f32 %v1948, 0.5
        %v2013 = vmul.f32 %v1949, 0.5
        %v2014 = vmul.f32 %v1950, 0.5
        %v2015 = vmul.f32 %v1983, %v1919
        %v2016 = vmul.f32 %v1984, %v1920
        %v2017 = vmul.f32 %v1985, %v1921
        %v2018 = vmul.f32 %v1986, %v1922
        %v2019 = vmul.f32 %v1987, %v1923
        %v2020 = vmul.f32 %v1988, %v1924
        %v2021 = vmul.f32 %v1989, %v1925
        %v2022 = vmul.f32 %v1990, %v1926
        %v2023 = vmul.f32 %v1991, %v1927
        %v2024 = vmul.f32 %v1992, %v1928
        %v2025 = vmul.f32 %v1993, %v1929
        %v2026 = vmul.f32 %v1994, %v1930
        %v2027 = vmul.f32 %v1995, %v1931
        %v2028 = vmul.f32 %v1996, %v1932
        %v2029 = vmul.f32 %v1997, %v1933
        %v2030 = vmul.f32 %v1998, %v1934
        %v2031 = vmul.f32 %v1999, %v1935
        %v2032 = vmul.f32 %v2000, %v1936
        %v2033 = vmul.f32 %v2001, %v1937
        %v2034 = vmul.f32 %v2002, %v1938
        %v2035 = vmul.f32 %v2003, %v1939
        %v2036 = vmul.f32 %v2004, %v1940
        %v2037 = vmul.f32 %v2005, %v1941
        %v2038 = vmul.f32 %v2006, %v1942
        %v2039 = vmul.f32 %v2007, %v1943
        %v2040 = vmul.f32 %v2008, %v1944
        %v2041 = vmul.f32 %v2009, %v1945
        %v2042 = vmul.f32 %v2010, %v1946
        %v2043 = vmul.f32 %v2011, %v1947
        %v2044 = vmul.f32 %v2012, %v1948
        %v2045 = vmul.f32 %v2013, %v1949
        %v2046 = vmul.f32 %v2014, %v1950
        %v2047 = vmul.f32 %v1951, 0.5
        %v2048 = vmul.f32 %v1952, 0.5
        %v2049 = vmul.f32 %v1953, 0.5
        %v2050 = vmul.f32 %v1954, 0.5
        %v2051 = vmul.f32 %v1955, 0.5
        %v2052 = vmul.f32 %v1956, 0.5
        %v2053 = vmul.f32 %v1957, 0.5
        %v2054 = vmul.f32 %v1958, 0.5
        %v2055 = vmul.f32 %v1959, 0.5
        %v2056 = vmul.f32 %v1960, 0.5
        %v2057 = vmul.f32 %v1961, 0.5
        %v2058 = vmul.f32 %v1962, 0.5
        %v2059 = vmul.f32 %v1963, 0.5
        %v2060 = vmul.f32 %v1964, 0.5
        %v2061 = vmul.f32 %v1965, 0.5
        %v2062 = vmul.f32 %v1966, 0.5
        %v2063 = vmul.f32 %v1967, 0.5
        %v2064 = vmul.f32 %v1968, 0.5
        %v2065 = vmul.f32 %v1969, 0.5
        %v2066 = vmul.f32 %v1970, 0.5
        %v2067 = vmul.f32 %v1971, 0.5
        %v2068 = vmul.f32 %v1972, 0.5
        %v2069 = vmul.f32 %v1973, 0.5
        %v2070 = vmul.f32 %v1974, 0.5
        %v2071 = vmul.f32 %v1975, 0.5
        %v2072 = vmul.f32 %v1976, 0.5
        %v2073 = vmul.f32 %v1977, 0.5
        %v2074 = vmul.f32 %v1978, 0.5
        %v2075 = vmul.f32 %v1979, 0.5
        %v2076 = vmul.f32 %v1980, 0.5
        %v2077 = vmul.f32 %v1981, 0.5
        %v2078 = vmul.f32 %v1982, 0.5
        %v2079 = vadd.f32 %v2015, %v2047
        %v2080 = vadd.f32 %v2016, %v2048
        %v2081 = vadd.f32 %v2017, %v2049
        %v2082 = vadd.f32 %v2018, %v2050
        %v2083 = vadd.f32 %v2019, %v2051
        %v2084 = vadd.f32 %v2020, %v2052
        %v2085 = vadd.f32 %v2021, %v2053
        %v2086 = vadd.f32 %v2022, %v2054
        %v2087 = vadd.f32 %v2023, %v2055
        %v2088 = vadd.f32 %v2024, %v2056
        %v2089 = vadd.f32 %v2025, %v2057
        %v2090 = vadd.f32 %v2026, %v2058
        %v2091 = vadd.f32 %v2027, %v2059
        %v2092 = vadd.f32 %v2028, %v2060
        %v2093 = vadd.f32 %v2029, %v2061
        %v2094 = vadd.f32 %v2030, %v2062
        %v2095 = vadd.f32 %v2031, %v2063
        %v2096 = vadd.f32 %v2032, %v2064
        %v2097 = vadd.f32 %v2033, %v2065
        %v2098 = vadd.f32 %v2034, %v2066
        %v2099 = vadd.f32 %v2035, %v2067
        %v2100 = vadd.f32 %v2036, %v2068
        %v2101 = vadd.f32 %v2037, %v2069
        %v2102 = vadd.f32 %v2038, %v2070
        %v2103 = vadd.f32 %v2039, %v2071
        %v2104 = vadd.f32 %v2040, %v2072
        %v2105 = vadd.f32 %v2041, %v2073
        %v2106 = vadd.f32 %v2042, %v2074
        %v2107 = vadd.f32 %v2043, %v2075
        %v2108 = vadd.f32 %v2044, %v2076
        %v2109 = vadd.f32 %v2045, %v2077
        %v2110 = vadd.f32 %v2046, %v2078
        %v2111 = vmul.f32 %v2047, %v1951
        %v2112 = vmul.f32 %v2048, %v1952
        %v2113 = vmul.f32 %v2049, %v1953
        %v2114 = vmul.f32 %v2050, %v1954
        %v2115 = vmul.f32 %v2051, %v1955
        %v2116 = vmul.f32 %v2052, %v1956
        %v2117 = vmul.f32 %v2053, %v1957
        %v2118 = vmul.f32 %v2054, %v1958
        %v2119 = vmul.f32 %v2055, %v1959
        %v2120 = vmul.f32 %v2056, %v1960
        %v2121 = vmul.f32 %v2057, %v1961
        %v2122 = vmul.f32 %v2058, %v1962
        %v2123 = vmul.f32 %v2059, %v1963
        %v2124 = vmul.f32 %v2060, %v1964
        %v2125 = vmul.f32 %v2061, %v1965
        %v2126 = vmul.f32 %v2062, %v1966
        %v2127 = vmul.f32 %v2063, %v1967
        %v2128 = vmul.f32 %v2064, %v1968
        %v2129 = vmul.f32 %v2065, %v1969
        %v2130 = vmul.f32 %v2066, %v1970
        %v2131 = vmul.f32 %v2067, %v1971
        %v2132 = vmul.f32 %v2068, %v1972
        %v2133 = vmul.f32 %v2069, %v1973
        %v2134 = vmul.f32 %v2070, %v1974
        %v2135 = vmul.f32 %v2071, %v1975
        %v2136 = vmul.f32 %v2072, %v1976
        %v2137 = vmul.f32 %v2073, %v1977
        %v2138 = vmul.f32 %v2074, %v1978
        %v2139 = vmul.f32 %v2075, %v1979
        %v2140 = vmul.f32 %v2076, %v1980
        %v2141 = vmul.f32 %v2077, %v1981
        %v2142 = vmul.f32 %v2078, %v1982
        %v2143 = vadd.f32 %v2079, %v2111
        %v2144 = vadd.f32 %v2080, %v2112
        %v2145 = vadd.f32 %v2081, %v2113
        %v2146 = vadd.f32 %v2082, %v2114
        %v2147 = vadd.f32 %v2083, %v2115
        %v2148 = vadd.f32 %v2084, %v2116
        %v2149 = vadd.f32 %v2085, %v2117
        %v2150 = vadd.f32 %v2086, %v2118
        %v2151 = vadd.f32 %v2087, %v2119
        %v2152 = vadd.f32 %v2088, %v2120
        %v2153 = vadd.f32 %v2089, %v2121
        %v2154 = vadd.f32 %v2090, %v2122
        %v2155 = vadd.f32 %v2091, %v2123
        %v2156 = vadd.f32 %v2092, %v2124
        %v2157 = vadd.f32 %v2093, %v2125
        %v2158 = vadd.f32 %v2094, %v2126
        %v2159 = vadd.f32 %v2095, %v2127
        %v2160 = vadd.f32 %v2096, %v2128
        %v2161 = vadd.f32 %v2097, %v2129
        %v2162 = vadd.f32 %v2098, %v2130
        %v2163 = vadd.f32 %v2099, %v2131
        %v2164 = vadd.f32 %v2100, %v2132
        %v2165 = vadd.f32 %v2101, %v2133
        %v2166 = vadd.f32 %v2102, %v2134
        %v2167 = vadd.f32 %v2103, %v2135
        %v2168 = vadd.f32 %v2104, %v2136
        %v2169 = vadd.f32 %v2105, %v2137
        %v2170 = vadd.f32 %v2106, %v2138
        %v2171 = vadd.f32 %v2107, %v2139
        %v2172 = vadd.f32 %v2108, %v2140
        %v2173 = vadd.f32 %v2109, %v2141
        %v2174 = vadd.f32 %v2110, %v2142
        %v2175 = vadd.f32 %v2143, %v2144
        %2176 = vadd.xlane.f32.xlu0 %v2175
        %v2177 = vpop.xlane.xlu0 %2176
        %v2178 = vadd.f32 %v2145, %v2146
        %2179 = vadd.xlane.f32.xlu0 %v2178
        %v2180 = vpop.xlane.xlu0 %2179
        %v2181 = vadd.f32 %v2147, %v2148
        %2182 = vadd.xlane.f32.xlu0 %v2181
        %v2183 = vpop.xlane.xlu0 %2182
        %v2184 = vadd.f32 %v2149, %v2150
        %2185 = vadd.xlane.f32.xlu0 %v2184
        %v2186 = vpop.xlane.xlu0 %2185
        %v2187 = vadd.f32 %v2151, %v2152
        %2188 = vadd.xlane.f32.xlu0 %v2187
        %v2189 = vpop.xlane.xlu0 %2188
        %v2190 = vadd.f32 %v2153, %v2154
        %2191 = vadd.xlane.f32.xlu0 %v2190
        %v2192 = vpop.xlane.xlu0 %2191
        %v2193 = vadd.f32 %v2155, %v2156
        %2194 = vadd.xlane.f32.xlu0 %v2193
        %v2195 = vpop.xlane.xlu0 %2194
        %v2196 = vadd.f32 %v2157, %v2158
        %2197 = vadd.xlane.f32.xlu0 %v2196
        %v2198 = vpop.xlane.xlu0 %2197
        %v2199 = vadd.f32 %v2159, %v2160
        %2200 = vadd.xlane.f32.xlu0 %v2199
        %v2201 = vpop.xlane.xlu0 %2200
        %v2202 = vadd.f32 %v2161, %v2162
        %2203 = vadd.xlane.f32.xlu0 %v2202
        %v2204 = vpop.xlane.xlu0 %2203
        %v2205 = vadd.f32 %v2163, %v2164
        %2206 = vadd.xlane.f32.xlu0 %v2205
        %v2207 = vpop.xlane.xlu0 %2206
        %v2208 = vadd.f32 %v2165, %v2166
        %2209 = vadd.xlane.f32.xlu0 %v2208
        %v2210 = vpop.xlane.xlu0 %2209
        %v2211 = vadd.f32 %v2167, %v2168
        %2212 = vadd.xlane.f32.xlu0 %v2211
        %v2213 = vpop.xlane.xlu0 %2212
        %v2214 = vadd.f32 %v2169, %v2170
        %2215 = vadd.xlane.f32.xlu0 %v2214
        %v2216 = vpop.xlane.xlu0 %2215
        %v2217 = vadd.f32 %v2171, %v2172
        %2218 = vadd.xlane.f32.xlu0 %v2217
        %v2219 = vpop.xlane.xlu0 %2218
        %v2220 = vadd.f32 %v2173, %v2174
        %2221 = vadd.xlane.f32.xlu0 %v2220
        %v2222 = vpop.xlane.xlu0 %2221
        %v2223 = vlaneseq
        %v2224 = vand.u32 %v2223, 127
        %vm2225 = vcmp.eq.s32.totalorder %v2224, 0
        %vm2226 = vcmp.eq.s32.totalorder %v2224, 1
        %vm2227 = vcmp.eq.s32.totalorder %v2224, 2
        %v2228 = vsel %vm2227, %v1662, 0.0
        %v2229 = vsel %vm2227, %v1663, 0.0
        %v2230 = vsel %vm2227, %v1664, 0.0
        %v2231 = vsel %vm2227, %v1665, 0.0
        %v2232 = vsel %vm2227, %v1666, 0.0
        %v2233 = vsel %vm2227, %v1667, 0.0
        %v2234 = vsel %vm2227, %v1668, 0.0
        %v2235 = vsel %vm2227, %v1669, 0.0
        %v2236 = vsel %vm2227, %v1670, 0.0
        %v2237 = vsel %vm2227, %v1671, 0.0
        %v2238 = vsel %vm2227, %v1672, 0.0
        %v2239 = vsel %vm2227, %v1673, 0.0
        %v2240 = vsel %vm2227, %v1674, 0.0
        %v2241 = vsel %vm2227, %v1675, 0.0
        %v2242 = vsel %vm2227, %v1676, 0.0
        %v2243 = vsel %vm2227, %v1677, 0.0
        %v2244 = vsel %vm2226, %v2177, %v2228
        %v2245 = vsel %vm2226, %v2180, %v2229
        %v2246 = vsel %vm2226, %v2183, %v2230
        %v2247 = vsel %vm2226, %v2186, %v2231
        %v2248 = vsel %vm2226, %v2189, %v2232
        %v2249 = vsel %vm2226, %v2192, %v2233
        %v2250 = vsel %vm2226, %v2195, %v2234
        %v2251 = vsel %vm2226, %v2198, %v2235
        %v2252 = vsel %vm2226, %v2201, %v2236
        %v2253 = vsel %vm2226, %v2204, %v2237
        %v2254 = vsel %vm2226, %v2207, %v2238
        %v2255 = vsel %vm2226, %v2210, %v2239
        %v2256 = vsel %vm2226, %v2213, %v2240
        %v2257 = vsel %vm2226, %v2216, %v2241
        %v2258 = vsel %vm2226, %v2219, %v2242
        %v2259 = vsel %vm2226, %v2222, %v2243
        %v2260 = vsel %vm2225, %v580, %v2244
        %v2261 = vsel %vm2225, %v581, %v2245
        %v2262 = vsel %vm2225, %v582, %v2246
        %v2263 = vsel %vm2225, %v583, %v2247
        %v2264 = vsel %vm2225, %v584, %v2248
        %v2265 = vsel %vm2225, %v585, %v2249
        %v2266 = vsel %vm2225, %v586, %v2250
        %v2267 = vsel %vm2225, %v587, %v2251
        %v2268 = vsel %vm2225, %v588, %v2252
        %v2269 = vsel %vm2225, %v589, %v2253
        %v2270 = vsel %vm2225, %v590, %v2254
        %v2271 = vsel %vm2225, %v591, %v2255
        %v2272 = vsel %vm2225, %v592, %v2256
        %v2273 = vsel %vm2225, %v593, %v2257
        %v2274 = vsel %vm2225, %v594, %v2258
        %v2275 = vsel %vm2225, %v595, %v2259
        %2276 = vst [vmem:[%s447] sm:$0xff] %v2260
        %2277 = vst [vmem:[%s447 + $0x8] sm:$0xff] %v2261
        %2278 = vst [vmem:[%s447 + $0x10] sm:$0xff] %v2262
        %2279 = vst [vmem:[%s447 + $0x18] sm:$0xff] %v2263
        %2280 = vst [vmem:[%s447 + $0x20] sm:$0xff] %v2264
        %2281 = vst [vmem:[%s447 + $0x28] sm:$0xff] %v2265
        %2282 = vst [vmem:[%s447 + $0x30] sm:$0xff] %v2266
        %2283 = vst [vmem:[%s447 + $0x38] sm:$0xff] %v2267
        %2284 = vst [vmem:[%s447 + $0x40] sm:$0xff] %v2268
        %2285 = vst [vmem:[%s447 + $0x48] sm:$0xff] %v2269
        %2286 = vst [vmem:[%s447 + $0x50] sm:$0xff] %v2270
        %2287 = vst [vmem:[%s447 + $0x58] sm:$0xff] %v2271
        %2288 = vst [vmem:[%s447 + $0x60] sm:$0xff] %v2272
        %2289 = vst [vmem:[%s447 + $0x68] sm:$0xff] %v2273
        %2290 = vst [vmem:[%s447 + $0x70] sm:$0xff] %v2274
        %2291 = vst [vmem:[%s447 + $0x78] sm:$0xff] %v2275
        %s2292 = sand.u32 %s235, 1
        %s2293 = scalar_lea.sflag [#allocation4], %s2292
        %s2294 = sand.u32 %s235, 1
        %s2295 = smul.addr %s2294, 256
        %s2296 = scalar_lea.vmem [#allocation11], %s2295
        %s2297 = sand.u32 %s261, 1
        %s2298 = scalar_lea.sflag [#allocation13], %s2297
        %s2299 = sand.u32 %s261, 1
        %s2300 = smul.addr %s2299, 128
        %s2301 = scalar_lea.vmem [#allocation12], %s2300
        // Predicated region
        $region77: #{tpu_custom_call.1} parent=55 // pred_check
          %p2302 = pneg %p245
        $region78: #{tpu_custom_call.1} parent=55 // pred_check_branch
          %2304 = sbr.rel (%p2302) target = $region80
        $region79: #{tpu_custom_call.1} parent=55 // pred_region
          %s2305 = smul.u32 16, %s33
          %s2307 = ssub.s32 4096, 4096
          %2308 = vsyncadd %s2293, %s2307
          %s2309 = smul.addr %s2305, 2
          %s2310 = smul.addr %s2309, 128
          %s2311 = scalar_lea.hbm %s9, %s2310
          %s2312 = sshll.u32 %s2296, 4
          %s2313 = int_to_ptr.vmem [resolvable:$true] %s2312
          %2318 = dma.vmem_to_hbm [thread:$0]  %s2313, 4096, %s2311, %s2293, 256, 256, 16
        $region80: #{tpu_custom_call.1} parent=55 // pred_fallthru
          _
        // Predicated region
        $region81: #{tpu_custom_call.1} parent=55 // pred_check
          %p2319 = pneg %p271
        $region82: #{tpu_custom_call.1} parent=55 // pred_check_branch
          %2321 = sbr.rel (%p2319) target = $region84
        $region83: #{tpu_custom_call.1} parent=55 // pred_region
          %s2322 = smul.u32 16, %s33
          %s2324 = ssub.s32 2048, 2048
          %2325 = vsyncadd %s2298, %s2324
          %s2326 = smul.addr %s2322, 128
          %s2327 = scalar_lea.hbm %s10, %s2326
          %s2328 = sshll.u32 %s2301, 4
          %s2329 = int_to_ptr.vmem [resolvable:$true] %s2328
          %2334 = dma.vmem_to_hbm [thread:$0]  %s2329, 2048, %s2327, %s2298, 128, 128, 8
        $region84: #{tpu_custom_call.1} parent=55 // pred_fallthru
          _
      $region56: #{tpu_custom_call.1} parent=5 // pred_fallthru
        _
      %p2335 = scmp.le.s32.totalorder 2, %s28
      // Predicated region
      $region85: #{tpu_custom_call.1} parent=5 // pred_check
        %p2336 = pneg %p2335
      $region86: #{tpu_custom_call.1} parent=5 // pred_check_branch
        %2338 = sbr.rel (%p2336) target = $region88
      $region87: #{tpu_custom_call.1} parent=5 // pred_region
        %s2339 = ssub.s32 %s28, 2
        // Predicated region
        $region89: #{tpu_custom_call.1} parent=87 // pred_check
          %p2340 = pneg %p251
        $region90: #{tpu_custom_call.1} parent=87 // pred_check_branch
          %2342 = sbr.rel (%p2340) target = $region92
        $region91: #{tpu_custom_call.1} parent=87 // pred_region
          %s2343 = sand.u32 %s236, 1
          %s2344 = scalar_lea.sflag [#allocation4], %s2343
          %s2345 = sand.u32 %s236, 1
          %s2346 = smul.addr %s2345, 256
          %s2347 = scalar_lea.vmem [#allocation11], %s2346
          %2348 = dma.done %s2344, 4096
        $region92: #{tpu_custom_call.1} parent=87 // pred_fallthru
          _
        // Predicated region
        $region93: #{tpu_custom_call.1} parent=87 // pred_check
          %p2349 = pneg %p277
        $region94: #{tpu_custom_call.1} parent=87 // pred_check_branch
          %2351 = sbr.rel (%p2349) target = $region96
        $region95: #{tpu_custom_call.1} parent=87 // pred_region
          %s2352 = sand.u32 %s262, 1
          %s2353 = scalar_lea.sflag [#allocation13], %s2352
          %s2354 = sand.u32 %s262, 1
          %s2355 = smul.addr %s2354, 128
          %s2356 = scalar_lea.vmem [#allocation12], %s2355
          %2357 = dma.done %s2353, 2048
        $region96: #{tpu_custom_call.1} parent=87 // pred_fallthru
          _
      $region88: #{tpu_custom_call.1} parent=5 // pred_fallthru
        _
    $region6: #{tpu_custom_call.1} parent=1 // loop_footer
      %s32 = sadd.s32 1, %s28
    $region7: #{tpu_custom_call.1} parent=1 // loop_footer_branch
      %27 = sbr.rel target = $region3
    $region8: #{tpu_custom_call.1} parent=1 // loop_exit
      _
    %2358 = vsyncpa [#allocation3], 1
    %s2359 = scalar_lea.sflag [#allocation3], 1
    %2360 = vsyncpa %s2359, 1
    %2361 = vsyncpa [#allocation6], 1
    %2362 = vsyncpa [#allocation9], 1
    %2363 = vsyncpa [#allocation4], 1
    %s2364 = scalar_lea.sflag [#allocation4], 1
    %2365 = vsyncpa %s2364, 1
    %2366 = vsyncpa [#allocation13], 1
    %s2367 = scalar_lea.sflag [#allocation13], 1
    %2368 = vsyncpa %s2367, 1

</llo_original>
